<compile_context>
chip_gen: v7x
topology: tpu7x:2x2x1
jax: 0.10.0
libtpu: 0.0.40
codegen_flags: <defaults>
</compile_context>

<pallas_src>
import math
import functools

import jax
import jax.numpy as jnp
from jax import lax
from jax.experimental import pallas as pl
from jax.experimental.pallas import tpu as pltpu


# ---------------------------------------------------------------------------
# Tiling helper
# ---------------------------------------------------------------------------

def _pick_tile(dim, cap, align):
    """Largest tile <= cap that divides dim and respects alignment (or full dim)."""
    if dim <= cap:
        return dim
    t = (cap // align) * align
    while t >= align:
        if dim % t == 0:
            return t
        t -= align
    return dim  # fallback: whole dim


# ---------------------------------------------------------------------------
# Rotary tables (host/XLA-side precompute, consumed by the QKV kernel epilogue)
# ---------------------------------------------------------------------------

def _rotary_tables(batch, seq_len, n_head, head_size, rot_dims, base=10000.0):
    """cos/sin tables of shape (B*T, n_head*head_size), identity on pass dims."""
    if rot_dims >= 2:
        inv_freq = 1.0 / (base ** (jnp.arange(0, rot_dims, 2, dtype=jnp.float32)
                                   / rot_dims))
        tpos = jnp.arange(seq_len, dtype=jnp.float32)
        freqs = tpos[:, None] * inv_freq[None, :]                 # (T, rot/2)
        emb = jnp.concatenate([freqs, freqs], axis=-1)            # (T, rot)
        cos_h = jnp.concatenate(
            [jnp.cos(emb), jnp.ones((seq_len, head_size - rot_dims), jnp.float32)],
            axis=-1)
        sin_h = jnp.concatenate(
            [jnp.sin(emb), jnp.zeros((seq_len, head_size - rot_dims), jnp.float32)],
            axis=-1)
    else:  # rotary disabled
        cos_h = jnp.ones((seq_len, head_size), jnp.float32)
        sin_h = jnp.zeros((seq_len, head_size), jnp.float32)
    cos_tab = jnp.tile(cos_h, (batch, n_head))                    # (B*T, H*D)
    sin_tab = jnp.tile(sin_h, (batch, n_head))
    return cos_tab, sin_tab


def _rotate_half_matrix(head_size, rot_dims, n_cols):
    """Block-diagonal signed permutation R so that (y @ R)[j] == rotate_half of the
    first rot_dims lanes of each head; remaining lanes hit zeros (masked by sin=0)."""
    half = rot_dims // 2
    j = jnp.arange(rot_dims)
    src = jnp.where(j < half, j + half, j - half)
    sgn = jnp.where(j < half, -1.0, 1.0).astype(jnp.float32)
    blk = jnp.zeros((head_size, head_size), jnp.float32).at[src, j].set(sgn)
    reps = n_cols // head_size
    return jnp.kron(jnp.eye(reps, dtype=jnp.float32), blk)        # (n_cols, n_cols)


# ---------------------------------------------------------------------------
# Fused QKV projection kernel (bias + rotary applied in the epilogue)
# ---------------------------------------------------------------------------

def _qkv_proj_kernel(x_ref, wq_ref, wk_ref, wv_ref, bq_ref, bk_ref, bv_ref,
                     cos_ref, sin_ref, rot_ref,
                     q_ref, k_ref, v_ref,
                     accq_ref, acck_ref, accv_ref):
    ks = pl.program_id(2)

    @pl.when(ks == 0)
    def _init():
        accq_ref[...] = jnp.zeros(accq_ref.shape, accq_ref.dtype)
        acck_ref[...] = jnp.zeros(acck_ref.shape, acck_ref.dtype)
        accv_ref[...] = jnp.zeros(accv_ref.shape, accv_ref.dtype)

    x = x_ref[...]                                     # (tm, tk) bf16, read once
    accq_ref[...] += jnp.dot(x, wq_ref[...], preferred_element_type=jnp.float32)
    acck_ref[...] += jnp.dot(x, wk_ref[...], preferred_element_type=jnp.float32)
    accv_ref[...] += jnp.dot(x, wv_ref[...], preferred_element_type=jnp.float32)

    @pl.when(ks == pl.num_programs(2) - 1)
    def _store():
        cos = cos_ref[...]
        sin = sin_ref[...]
        rot = rot_ref[...]
        q = accq_ref[...] + bq_ref[...]
        k = acck_ref[...] + bk_ref[...]
        # rotate_half via a tiny block-diagonal signed permutation (bf16 MXU),
        # applied ONCE per element (hoisted out of the attention inner loop).
        q_half = jnp.dot(q.astype(rot.dtype), rot, preferred_element_type=jnp.float32)
        k_half = jnp.dot(k.astype(rot.dtype), rot, preferred_element_type=jnp.float32)
        q_ref[...] = (q * cos + q_half * sin).astype(q_ref.dtype)
        k_ref[...] = (k * cos + k_half * sin).astype(k_ref.dtype)
        v_ref[...] = (accv_ref[...] + bv_ref[...]).astype(v_ref.dtype)


def _qkv_projection(x2d, wq, wk, wv, bq, bk, bv, cos_tab, sin_tab, *,
                    head_size, rot_dims, out_dtype=jnp.bfloat16,
                    tm_cap=256, tn_cap=256, tk_cap=512):
    m, c = x2d.shape
    a = wq.shape[1]
    tm = _pick_tile(m, tm_cap, 8)
    tn = _pick_tile(a, tn_cap, 128)
    tk = _pick_tile(c, tk_cap, 128)
    assert tn % head_size == 0, "column tiles must be head-aligned for rotary"
    grid = (m // tm, a // tn, c // tk)

    rot_mat = _rotate_half_matrix(head_size, rot_dims, tn).astype(jnp.bfloat16)

    row_col = lambda i, j, k: (i, j)
    w_spec = pl.BlockSpec((tk, tn), lambda i, j, k: (k, j))
    b_spec = pl.BlockSpec((1, tn), lambda i, j, k: (0, j))
    oshape = jax.ShapeDtypeStruct((m, a), out_dtype)
    ospec = pl.BlockSpec((tm, tn), row_col)

    return pl.pallas_call(
        _qkv_proj_kernel,
        out_shape=(oshape, oshape, oshape),
        grid=grid,
        in_specs=[
            pl.BlockSpec((tm, tk), lambda i, j, k: (i, k)),      # x (read once)
            w_spec, w_spec, w_spec,                              # wq, wk, wv
            b_spec, b_spec, b_spec,                              # bq, bk, bv
            pl.BlockSpec((tm, tn), row_col),                     # cos table
            pl.BlockSpec((tm, tn), row_col),                     # sin table
            pl.BlockSpec((tn, tn), lambda i, j, k: (0, 0)),      # rotate-half R
        ],
        out_specs=(ospec, ospec, ospec),
        scratch_shapes=[
            pltpu.VMEM((tm, tn), jnp.float32),
            pltpu.VMEM((tm, tn), jnp.float32),
            pltpu.VMEM((tm, tn), jnp.float32),
        ],
        compiler_params=pltpu.CompilerParams(
            dimension_semantics=("parallel", "parallel", "arbitrary")),
    )(x2d, wq, wk, wv, bq, bk, bv, cos_tab, sin_tab, rot_mat)


# ---------------------------------------------------------------------------
# Flash attention kernel: heads packed into the lane dim, causal, online softmax
# ---------------------------------------------------------------------------

def _flash_attn_kernel(q_ref, k_ref, v_ref, o_ref, m_ref, l_ref, acc_ref,
                       *, scale, n_head, head_size):
    qi = pl.program_id(1)
    ki = pl.program_id(2)

    @pl.when(ki == 0)
    def _init():
        m_ref[...] = jnp.full(m_ref.shape, -jnp.inf, m_ref.dtype)
        l_ref[...] = jnp.zeros(l_ref.shape, l_ref.dtype)
        acc_ref[...] = jnp.zeros(acc_ref.shape, acc_ref.dtype)

    # Skip fully-masked (strictly upper-triangular) KV blocks; their DMA is also
    # skipped because the index_map clamps the block index to min(ki, qi).
    @pl.when(ki <= qi)
    def _compute():
        q = q_ref[...]                                  # (tq, H*D) bf16
        k = k_ref[...]                                  # (tk, H*D) bf16
        v = v_ref[...]                                  # (tk, H*D) bf16
        tq, tk = q.shape[0], k.shape[0]
        row = qi * tq + lax.broadcasted_iota(jnp.int32, (tq, tk), 0)
        col = ki * tk + lax.broadcasted_iota(jnp.int32, (tq, tk), 1)
        causal = col <= row

        for h in range(n_head):                         # static unroll over heads
            sl = slice(h * head_size, (h + 1) * head_size)
            s = lax.dot_general(q[:, sl], k[:, sl],
                                (((1,), (1,)), ((), ())),
                                preferred_element_type=jnp.float32) * scale
            s = jnp.where(causal, s, -jnp.inf)
            m_prev = m_ref[:, h:h + 1]
            m_new = jnp.maximum(m_prev, jnp.max(s, axis=-1, keepdims=True))
            alpha = jnp.exp(m_prev - m_new)
            p = jnp.exp(s - m_new)
            l_ref[:, h:h + 1] = alpha * l_ref[:, h:h + 1] + jnp.sum(
                p, axis=-1, keepdims=True)
            acc_ref[:, sl] = alpha * acc_ref[:, sl] + jnp.dot(
                p.astype(v.dtype), v[:, sl], preferred_element_type=jnp.float32)
            m_ref[:, h:h + 1] = m_new

    @pl.when(ki == pl.num_programs(2) - 1)
    def _finalize():
        inv_l = pl.reciprocal(l_ref[...], approx=True)  # (tq, H)
        tq = inv_l.shape[0]
        norm = jnp.concatenate(
            [jnp.broadcast_to(inv_l[:, h:h + 1], (tq, head_size))
             for h in range(n_head)], axis=1)           # (tq, H*D) lane-dense
        o_ref[...] = (acc_ref[...] * norm).astype(o_ref.dtype)


def _flash_attention(q, k, v, *, n_head, scale, tq_cap=256):
    b, t, a = q.shape
    head_size = a // n_head
    tq = _pick_tile(t, tq_cap, 8)
    tk = tq                              # equal tiles keep the diagonal math simple
    grid = (b, t // tq, t // tk)

    q_idx = lambda bi, qi, ki: (bi, qi, 0)
    # Clamp so masked (ki > qi) iterations reuse the previous K/V block -> no DMA.
    kv_idx = lambda bi, qi, ki: (bi, jnp.minimum(ki, qi), 0)

    kernel = functools.partial(_flash_attn_kernel, scale=scale,
                               n_head=n_head, head_size=head_size)
    return pl.pallas_call(
        kernel,
        out_shape=jax.ShapeDtypeStruct((b, t, a), q.dtype),
        grid=grid,
        in_specs=[
            pl.BlockSpec((None, tq, a), q_idx),          # q (all heads packed)
            pl.BlockSpec((None, tk, a), kv_idx),         # k
            pl.BlockSpec((None, tk, a), kv_idx),         # v
        ],
        out_specs=pl.BlockSpec((None, tq, a), q_idx),    # lane-dense (B, T, H*D)
        scratch_shapes=[
            pltpu.VMEM((tq, n_head), jnp.float32),       # running max per head
            pltpu.VMEM((tq, n_head), jnp.float32),       # running sum per head
            pltpu.VMEM((tq, a), jnp.float32),            # lane-dense accumulator
        ],
        compiler_params=pltpu.CompilerParams(
            dimension_semantics=("parallel", "parallel", "arbitrary")),
    )(q, k, v)


# ---------------------------------------------------------------------------
# Tiled output projection:  o = x @ w + b
# ---------------------------------------------------------------------------

def _linear_kernel(x_ref, w_ref, b_ref, o_ref, acc_ref):
    @pl.when(pl.program_id(2) == 0)
    def _init():
        acc_ref[...] = jnp.zeros(acc_ref.shape, acc_ref.dtype)

    acc_ref[...] += jnp.dot(x_ref[...], w_ref[...],
                            preferred_element_type=jnp.float32)

    @pl.when(pl.program_id(2) == pl.num_programs(2) - 1)
    def _store():
        o_ref[...] = (acc_ref[...] + b_ref[...]).astype(o_ref.dtype)


def _linear(x2d, w, b2d, *, out_dtype, tm_cap=256, tn_cap=256, tk_cap=512):
    m, kdim = x2d.shape
    n = w.shape[1]
    tm = _pick_tile(m, tm_cap, 8)
    tn = _pick_tile(n, tn_cap, 128)
    tk = _pick_tile(kdim, tk_cap, 128)
    grid = (m // tm, n // tn, kdim // tk)
    return pl.pallas_call(
        _linear_kernel,
        out_shape=jax.ShapeDtypeStruct((m, n), out_dtype),
        grid=grid,
        in_specs=[
            pl.BlockSpec((tm, tk), lambda i, j, k: (i, k)),
            pl.BlockSpec((tk, tn), lambda i, j, k: (k, j)),
            pl.BlockSpec((1, tn), lambda i, j, k: (0, j)),
        ],
        out_specs=pl.BlockSpec((tm, tn), lambda i, j, k: (i, j)),
        scratch_shapes=[pltpu.VMEM((tm, tn), jnp.float32)],
        compiler_params=pltpu.CompilerParams(
            dimension_semantics=("parallel", "parallel", "arbitrary")),
    )(x2d, w, b2d)


# ---------------------------------------------------------------------------
# MHA forward
# ---------------------------------------------------------------------------

def mha_forward(x, params, *, n_head, rotary_pos_emb=True):
    """x: (B, T, C) float32.  params: prepared via prepare_params() (bf16 weights)."""
    b, t, c = x.shape
    a = params["wq"].shape[1]
    head_size = a // n_head
    rot_dims = int(head_size * 0.5)
    scale = 1.0 / math.sqrt(head_size)

    x2 = x.reshape(b * t, c).astype(jnp.bfloat16)
    cos_tab, sin_tab = _rotary_tables(
        b, t, n_head, head_size, rot_dims if rotary_pos_emb else 0)

    # Fused QKV projection + bias + rotary (x read from HBM once).
    q, k, v = _qkv_projection(x2, params["wq"], params["wk"], params["wv"],
                              params["bq"], params["bk"], params["bv"],
                              cos_tab, sin_tab,
                              head_size=head_size, rot_dims=rot_dims)

    # (B*T, H*D) -> (B, T, H*D): metadata-only reshape, no HBM transpose.
    q = q.reshape(b, t, a)
    k = k.reshape(b, t, a)
    v = v.reshape(b, t, a)

    y = _flash_attention(q, k, v, n_head=n_head, scale=scale)    # (B, T, H*D)

    y2 = y.reshape(b * t, a)                                      # free reshape
    out = _linear(y2, params["wo"], params["bo"], out_dtype=jnp.float32)
    return out.reshape(b, t, c)


# ---------------------------------------------------------------------------
# Parameters
# ---------------------------------------------------------------------------

def init_params(key, n_embd, n_attn):
    """Matches nn.Linear shapes/init (uniform +-1/sqrt(fan_in)); synthetic weights."""
    def lin(kk, fan_in, fan_out):
        kw, kb = jax.random.split(kk)
        bound = 1.0 / math.sqrt(fan_in)
        w = jax.random.uniform(kw, (fan_in, fan_out), jnp.float32, -bound, bound)
        bb = jax.random.uniform(kb, (fan_out,), jnp.float32, -bound, bound)
        return w, bb

    kq, kk_, kv, ko = jax.random.split(key, 4)
    wq, bq = lin(kq, n_embd, n_attn)
    wk, bk = lin(kk_, n_embd, n_attn)
    wv, bv = lin(kv, n_embd, n_attn)
    wo, bo = lin(ko, n_attn, n_embd)
    return dict(wq=wq, bq=bq, wk=wk, bk=bk, wv=wv, bv=bv, wo=wo, bo=bo)


def prepare_params(params):
    """Hoisted, one-time conversion: bf16 MXU weights, (1, N) f32 biases."""
    def w(name):
        return params[name].astype(jnp.bfloat16)

    def b(name):
        return params[name].reshape(1, -1).astype(jnp.float32)

    return dict(wq=w("wq"), wk=w("wk"), wv=w("wv"), wo=w("wo"),
                bq=b("bq"), bk=b("bk"), bv=b("bv"), bo=b("bo"))


# ---------------------------------------------------------------------------
# Plain-JAX reference (mirrors the PyTorch module) for a sanity check
# ---------------------------------------------------------------------------

def _mha_reference(x, params, n_head):
    b, t, c = x.shape
    n_attn = params["wq"].shape[1]
    d = n_attn // n_head
    x2 = x.reshape(b * t, c)
    q = (x2 @ params["wq"] + params["bq"]).reshape(b, t, n_head, d).transpose(0, 2, 1, 3)
    k = (x2 @ params["wk"] + params["bk"]).reshape(b, t, n_head, d).transpose(0, 2, 1, 3)
    v = (x2 @ params["wv"] + params["bv"]).reshape(b, t, n_head, d).transpose(0, 2, 1, 3)
    rot = int(d * 0.5)
    inv_freq = 1.0 / (10000.0 ** (jnp.arange(0, rot, 2, dtype=jnp.float32) / rot))
    freqs = jnp.arange(t, dtype=jnp.float32)[:, None] * inv_freq[None, :]
    emb = jnp.concatenate([freqs, freqs], -1)
    cos, sin = jnp.cos(emb), jnp.sin(emb)

    def rh(a_):
        h = a_.shape[-1] // 2
        return jnp.concatenate([-a_[..., h:], a_[..., :h]], -1)

    qr, qp = q[..., :rot], q[..., rot:]
    kr, kp = k[..., :rot], k[..., rot:]
    qr = qr * cos + rh(qr) * sin
    kr = kr * cos + rh(kr) * sin
    q = jnp.concatenate([qr, qp], -1)
    k = jnp.concatenate([kr, kp], -1)
    att = jnp.einsum("bhqd,bhkd->bhqk", q, k) / math.sqrt(d)
    mask = jnp.tril(jnp.ones((t, t), bool))
    att = jax.nn.softmax(jnp.where(mask, att, -jnp.inf), axis=-1)
    y = jnp.einsum("bhqk,bhkd->bhqd", att, v)
    y = y.transpose(0, 2, 1, 3).reshape(b * t, n_attn)
    return (y @ params["wo"] + params["bo"]).reshape(b, t, c)


if __name__ == "__main__":
    # small config consistent with the module
    B, T = 2, 8
    n_embd, n_attn, n_head, ctx_len = 32, 32, 4, 16
    assert n_attn % n_head == 0 and T <= ctx_len

    key = jax.random.PRNGKey(0)
    kx, kp = jax.random.split(key)
    x = jax.random.normal(kx, (B, T, n_embd), dtype=jnp.float32)
    params = init_params(kp, n_embd, n_attn)
    fused = prepare_params(params)   # one-time bf16 cast / bias reshape (hoisted)

    fwd = jax.jit(functools.partial(mha_forward, n_head=n_head, rotary_pos_emb=True))
    out = fwd(x, fused)
    jax.block_until_ready(out)
    assert out.shape == (B, T, n_embd)

    ref = _mha_reference(x, params, n_head)
    max_err = float(jnp.max(jnp.abs(out - ref)))
    # bf16 MXU operands and bf16 activations between kernels -> relaxed tolerance.
    assert max_err < 5e-2, f"max abs err {max_err}"
    print("KERNEL_OK")
</pallas_src>

<mosaic_0001>
module attributes {stable_mosaic.version = 11 : i64} {
  func.func @_qkv_proj_kernel(%arg0: i32, %arg1: i32, %arg2: i32, %arg3: memref<16x32xbf16, #tpu.memory_space<vmem>>, %arg4: memref<32x32xbf16, #tpu.memory_space<vmem>>, %arg5: memref<32x32xbf16, #tpu.memory_space<vmem>>, %arg6: memref<32x32xbf16, #tpu.memory_space<vmem>>, %arg7: memref<1x32xf32, #tpu.memory_space<vmem>>, %arg8: memref<1x32xf32, #tpu.memory_space<vmem>>, %arg9: memref<1x32xf32, #tpu.memory_space<vmem>>, %arg10: memref<16x32xf32, #tpu.memory_space<vmem>>, %arg11: memref<16x32xf32, #tpu.memory_space<vmem>>, %arg12: memref<32x32xbf16, #tpu.memory_space<vmem>>, %arg13: memref<16x32xbf16, #tpu.memory_space<vmem>>, %arg14: memref<16x32xbf16, #tpu.memory_space<vmem>>, %arg15: memref<16x32xbf16, #tpu.memory_space<vmem>>, %arg16: memref<16x32xf32, #tpu.memory_space<vmem>>, %arg17: memref<16x32xf32, #tpu.memory_space<vmem>>, %arg18: memref<16x32xf32, #tpu.memory_space<vmem>>) attributes {dimension_semantics = [#tpu.dimension_semantics<parallel>, #tpu.dimension_semantics<parallel>, #tpu.dimension_semantics<arbitrary>], iteration_bounds = array<i64: 1, 1, 1>, scalar_prefetch = 0 : i64, scratch_operands = 3 : i64, tpu.core_type = #tpu.core_type<tc>, window_params = [{transform_indices = @transform_0, window_bounds = array<i64: 16, 32>}, {transform_indices = @transform_1, window_bounds = array<i64: 32, 32>}, {transform_indices = @transform_2, window_bounds = array<i64: 32, 32>}, {transform_indices = @transform_3, window_bounds = array<i64: 32, 32>}, {transform_indices = @transform_4, window_bounds = array<i64: 1, 32>}, {transform_indices = @transform_5, window_bounds = array<i64: 1, 32>}, {transform_indices = @transform_6, window_bounds = array<i64: 1, 32>}, {transform_indices = @transform_7, window_bounds = array<i64: 16, 32>}, {transform_indices = @transform_8, window_bounds = array<i64: 16, 32>}, {pipeline_mode = #tpu.pipeline_mode<synchronous>, transform_indices = @transform_9, window_bounds = array<i64: 32, 32>}, {transform_indices = @transform_10, window_bounds = array<i64: 16, 32>}, {transform_indices = @transform_11, window_bounds = array<i64: 16, 32>}, {transform_indices = @transform_12, window_bounds = array<i64: 16, 32>}]} {
    %c0_i32 = arith.constant 0 : i32
    %0 = arith.cmpi eq, %arg2, %c0_i32 : i32
    %1 = arith.extui %0 : i1 to i32
    %c0_i32_0 = arith.constant 0 : i32
    %2 = arith.cmpi ne, %1, %c0_i32_0 : i32
    scf.if %2 {
      %cst_24 = arith.constant 0.000000e+00 : f32
      %22 = vector.broadcast %cst_24 : f32 to vector<16x32xf32>
      %c0_25 = arith.constant 0 : index
      %c0_26 = arith.constant 0 : index
      %23 = vector.load %arg16[%c0_25, %c0_26] : memref<16x32xf32, #tpu.memory_space<vmem>>, vector<16x32xf32>
      tpu.vector_store %arg16[%c0_25, %c0_26], %22 {strides = array<i32>} : memref<16x32xf32, #tpu.memory_space<vmem>>, vector<16x32xf32>,
      %cst_27 = arith.constant 0.000000e+00 : f32
      %24 = vector.broadcast %cst_27 : f32 to vector<16x32xf32>
      %c0_28 = arith.constant 0 : index
      %c0_29 = arith.constant 0 : index
      %25 = vector.load %arg17[%c0_28, %c0_29] : memref<16x32xf32, #tpu.memory_space<vmem>>, vector<16x32xf32>
      tpu.vector_store %arg17[%c0_28, %c0_29], %24 {strides = array<i32>} : memref<16x32xf32, #tpu.memory_space<vmem>>, vector<16x32xf32>,
      %cst_30 = arith.constant 0.000000e+00 : f32
      %26 = vector.broadcast %cst_30 : f32 to vector<16x32xf32>
      %c0_31 = arith.constant 0 : index
      %c0_32 = arith.constant 0 : index
      %27 = vector.load %arg18[%c0_31, %c0_32] : memref<16x32xf32, #tpu.memory_space<vmem>>, vector<16x32xf32>
      tpu.vector_store %arg18[%c0_31, %c0_32], %26 {strides = array<i32>} : memref<16x32xf32, #tpu.memory_space<vmem>>, vector<16x32xf32>,
    } else {
    }
    %c0 = arith.constant 0 : index
    %c0_1 = arith.constant 0 : index
    %3 = vector.load %arg3[%c0, %c0_1] : memref<16x32xbf16, #tpu.memory_space<vmem>>, vector<16x32xbf16>
    %c0_2 = arith.constant 0 : index
    %c0_3 = arith.constant 0 : index
    %4 = vector.load %arg16[%c0_2, %c0_3] : memref<16x32xf32, #tpu.memory_space<vmem>>, vector<16x32xf32>
    %c0_4 = arith.constant 0 : index
    %c0_5 = arith.constant 0 : index
    %5 = vector.load %arg4[%c0_4, %c0_5] : memref<32x32xbf16, #tpu.memory_space<vmem>>, vector<32x32xbf16>
    %cst = arith.constant dense<0.000000e+00> : vector<16x32xf32>
    %6 = tpu.matmul %3, %5, %cst {dimension_numbers = #tpu.dot_dimension_numbers<[1], [0], [0], [1], [0, 0, 1, 1], [], []>} : vector<16x32xbf16>, vector<32x32xbf16>, vector<16x32xf32> -> vector<16x32xf32>
    %7 = arith.addf %4, %6 : vector<16x32xf32>
    %c0_6 = arith.constant 0 : index
    %c0_7 = arith.constant 0 : index
    %8 = vector.load %arg16[%c0_6, %c0_7] : memref<16x32xf32, #tpu.memory_space<vmem>>, vector<16x32xf32>
    tpu.vector_store %arg16[%c0_6, %c0_7], %7 {strides = array<i32>} : memref<16x32xf32, #tpu.memory_space<vmem>>, vector<16x32xf32>,
    %c0_8 = arith.constant 0 : index
    %c0_9 = arith.constant 0 : index
    %9 = vector.load %arg17[%c0_8, %c0_9] : memref<16x32xf32, #tpu.memory_space<vmem>>, vector<16x32xf32>
    %c0_10 = arith.constant 0 : index
    %c0_11 = arith.constant 0 : index
    %10 = vector.load %arg5[%c0_10, %c0_11] : memref<32x32xbf16, #tpu.memory_space<vmem>>, vector<32x32xbf16>
    %cst_12 = arith.constant dense<0.000000e+00> : vector<16x32xf32>
    %11 = tpu.matmul %3, %10, %cst_12 {dimension_numbers = #tpu.dot_dimension_numbers<[1], [0], [0], [1], [0, 0, 1, 1], [], []>} : vector<16x32xbf16>, vector<32x32xbf16>, vector<16x32xf32> -> vector<16x32xf32>
    %12 = arith.addf %9, %11 : vector<16x32xf32>
    %c0_13 = arith.constant 0 : index
    %c0_14 = arith.constant 0 : index
    %13 = vector.load %arg17[%c0_13, %c0_14] : memref<16x32xf32, #tpu.memory_space<vmem>>, vector<16x32xf32>
    tpu.vector_store %arg17[%c0_13, %c0_14], %12 {strides = array<i32>} : memref<16x32xf32, #tpu.memory_space<vmem>>, vector<16x32xf32>,
    %c0_15 = arith.constant 0 : index
    %c0_16 = arith.constant 0 : index
    %14 = vector.load %arg18[%c0_15, %c0_16] : memref<16x32xf32, #tpu.memory_space<vmem>>, vector<16x32xf32>
    %c0_17 = arith.constant 0 : index
    %c0_18 = arith.constant 0 : index
    %15 = vector.load %arg6[%c0_17, %c0_18] : memref<32x32xbf16, #tpu.memory_space<vmem>>, vector<32x32xbf16>
    %cst_19 = arith.constant dense<0.000000e+00> : vector<16x32xf32>
    %16 = tpu.matmul %3, %15, %cst_19 {dimension_numbers = #tpu.dot_dimension_numbers<[1], [0], [0], [1], [0, 0, 1, 1], [], []>} : vector<16x32xbf16>, vector<32x32xbf16>, vector<16x32xf32> -> vector<16x32xf32>
    %17 = arith.addf %14, %16 : vector<16x32xf32>
    %c0_20 = arith.constant 0 : index
    %c0_21 = arith.constant 0 : index
    %18 = vector.load %arg18[%c0_20, %c0_21] : memref<16x32xf32, #tpu.memory_space<vmem>>, vector<16x32xf32>
    tpu.vector_store %arg18[%c0_20, %c0_21], %17 {strides = array<i32>} : memref<16x32xf32, #tpu.memory_space<vmem>>, vector<16x32xf32>,
    %c0_i32_22 = arith.constant 0 : i32
    %19 = arith.cmpi eq, %arg2, %c0_i32_22 : i32
    %20 = arith.extui %19 : i1 to i32
    %c0_i32_23 = arith.constant 0 : i32
    %21 = arith.cmpi ne, %20, %c0_i32_23 : i32
    scf.if %21 {
      %c0_24 = arith.constant 0 : index
      %c0_25 = arith.constant 0 : index
      %22 = vector.load %arg10[%c0_24, %c0_25] : memref<16x32xf32, #tpu.memory_space<vmem>>, vector<16x32xf32>
      %c0_26 = arith.constant 0 : index
      %c0_27 = arith.constant 0 : index
      %23 = vector.load %arg11[%c0_26, %c0_27] : memref<16x32xf32, #tpu.memory_space<vmem>>, vector<16x32xf32>
      %c0_28 = arith.constant 0 : index
      %c0_29 = arith.constant 0 : index
      %24 = vector.load %arg12[%c0_28, %c0_29] : memref<32x32xbf16, #tpu.memory_space<vmem>>, vector<32x32xbf16>
      %c0_30 = arith.constant 0 : index
      %c0_31 = arith.constant 0 : index
      %25 = vector.load %arg16[%c0_30, %c0_31] : memref<16x32xf32, #tpu.memory_space<vmem>>, vector<16x32xf32>
      %c0_32 = arith.constant 0 : index
      %c0_33 = arith.constant 0 : index
      %26 = vector.load %arg7[%c0_32, %c0_33] : memref<1x32xf32, #tpu.memory_space<vmem>>, vector<1x32xf32>
      %27 = vector.broadcast %26 : vector<1x32xf32> to vector<16x32xf32>
      %28 = arith.addf %25, %27 : vector<16x32xf32>
      %c0_34 = arith.constant 0 : index
      %c0_35 = arith.constant 0 : index
      %29 = vector.load %arg17[%c0_34, %c0_35] : memref<16x32xf32, #tpu.memory_space<vmem>>, vector<16x32xf32>
      %c0_36 = arith.constant 0 : index
      %c0_37 = arith.constant 0 : index
      %30 = vector.load %arg8[%c0_36, %c0_37] : memref<1x32xf32, #tpu.memory_space<vmem>>, vector<1x32xf32>
      %31 = vector.broadcast %30 : vector<1x32xf32> to vector<16x32xf32>
      %32 = arith.addf %29, %31 : vector<16x32xf32>
      %33 = arith.truncf %28 : vector<16x32xf32> to vector<16x32xbf16>
      %cst_38 = arith.constant dense<0.000000e+00> : vector<16x32xf32>
      %34 = tpu.matmul %33, %24, %cst_38 {dimension_numbers = #tpu.dot_dimension_numbers<[1], [0], [0], [1], [0, 0, 1, 1], [], []>} : vector<16x32xbf16>, vector<32x32xbf16>, vector<16x32xf32> -> vector<16x32xf32>
      %35 = arith.truncf %32 : vector<16x32xf32> to vector<16x32xbf16>
      %cst_39 = arith.constant dense<0.000000e+00> : vector<16x32xf32>
      %36 = tpu.matmul %35, %24, %cst_39 {dimension_numbers = #tpu.dot_dimension_numbers<[1], [0], [0], [1], [0, 0, 1, 1], [], []>} : vector<16x32xbf16>, vector<32x32xbf16>, vector<16x32xf32> -> vector<16x32xf32>
      %37 = arith.mulf %28, %22 : vector<16x32xf32>
      %38 = arith.mulf %34, %23 : vector<16x32xf32>
      %39 = arith.addf %37, %38 : vector<16x32xf32>
      %40 = arith.truncf %39 : vector<16x32xf32> to vector<16x32xbf16>
      %c0_40 = arith.constant 0 : index
      %c0_41 = arith.constant 0 : index
      %41 = vector.load %arg13[%c0_40, %c0_41] : memref<16x32xbf16, #tpu.memory_space<vmem>>, vector<16x32xbf16>
      tpu.vector_store %arg13[%c0_40, %c0_41], %40 {strides = array<i32>} : memref<16x32xbf16, #tpu.memory_space<vmem>>, vector<16x32xbf16>,
      %42 = arith.mulf %32, %22 : vector<16x32xf32>
      %43 = arith.mulf %36, %23 : vector<16x32xf32>
      %44 = arith.addf %42, %43 : vector<16x32xf32>
      %45 = arith.truncf %44 : vector<16x32xf32> to vector<16x32xbf16>
      %c0_42 = arith.constant 0 : index
      %c0_43 = arith.constant 0 : index
      %46 = vector.load %arg14[%c0_42, %c0_43] : memref<16x32xbf16, #tpu.memory_space<vmem>>, vector<16x32xbf16>
      tpu.vector_store %arg14[%c0_42, %c0_43], %45 {strides = array<i32>} : memref<16x32xbf16, #tpu.memory_space<vmem>>, vector<16x32xbf16>,
      %c0_44 = arith.constant 0 : index
      %c0_45 = arith.constant 0 : index
      %47 = vector.load %arg18[%c0_44, %c0_45] : memref<16x32xf32, #tpu.memory_space<vmem>>, vector<16x32xf32>
      %c0_46 = arith.constant 0 : index
      %c0_47 = arith.constant 0 : index
      %48 = vector.load %arg9[%c0_46, %c0_47] : memref<1x32xf32, #tpu.memory_space<vmem>>, vector<1x32xf32>
      %49 = vector.broadcast %48 : vector<1x32xf32> to vector<16x32xf32>
      %50 = arith.addf %47, %49 : vector<16x32xf32>
      %51 = arith.truncf %50 : vector<16x32xf32> to vector<16x32xbf16>
      %c0_48 = arith.constant 0 : index
      %c0_49 = arith.constant 0 : index
      %52 = vector.load %arg15[%c0_48, %c0_49] : memref<16x32xbf16, #tpu.memory_space<vmem>>, vector<16x32xbf16>
      tpu.vector_store %arg15[%c0_48, %c0_49], %51 {strides = array<i32>} : memref<16x32xbf16, #tpu.memory_space<vmem>>, vector<16x32xbf16>,
    } else {
    }
    return
  }
  func.func @transform_0(%arg0: i32, %arg1: i32, %arg2: i32) -> (i32, i32) {
    %c0_i32 = arith.constant 0 : i32
    return %arg0, %arg2 : i32, i32
  }
  func.func @transform_1(%arg0: i32, %arg1: i32, %arg2: i32) -> (i32, i32) {
    %c0_i32 = arith.constant 0 : i32
    return %arg2, %arg1 : i32, i32
  }
  func.func @transform_2(%arg0: i32, %arg1: i32, %arg2: i32) -> (i32, i32) {
    %c0_i32 = arith.constant 0 : i32
    return %arg2, %arg1 : i32, i32
  }
  func.func @transform_3(%arg0: i32, %arg1: i32, %arg2: i32) -> (i32, i32) {
    %c0_i32 = arith.constant 0 : i32
    return %arg2, %arg1 : i32, i32
  }
  func.func @transform_4(%arg0: i32, %arg1: i32, %arg2: i32) -> (i32, i32) {
    %c0_i32 = arith.constant 0 : i32
    %c0_i32_0 = arith.constant 0 : i32
    return %c0_i32, %arg1 : i32, i32
  }
  func.func @transform_5(%arg0: i32, %arg1: i32, %arg2: i32) -> (i32, i32) {
    %c0_i32 = arith.constant 0 : i32
    %c0_i32_0 = arith.constant 0 : i32
    return %c0_i32, %arg1 : i32, i32
  }
  func.func @transform_6(%arg0: i32, %arg1: i32, %arg2: i32) -> (i32, i32) {
    %c0_i32 = arith.constant 0 : i32
    %c0_i32_0 = arith.constant 0 : i32
    return %c0_i32, %arg1 : i32, i32
  }
  func.func @transform_7(%arg0: i32, %arg1: i32, %arg2: i32) -> (i32, i32) {
    %c0_i32 = arith.constant 0 : i32
    return %arg0, %arg1 : i32, i32
  }
  func.func @transform_8(%arg0: i32, %arg1: i32, %arg2: i32) -> (i32, i32) {
    %c0_i32 = arith.constant 0 : i32
    return %arg0, %arg1 : i32, i32
  }
  func.func @transform_9(%arg0: i32, %arg1: i32, %arg2: i32) -> (i32, i32) {
    %c0_i32 = arith.constant 0 : i32
    %c0_i32_0 = arith.constant 0 : i32
    %c0_i32_1 = arith.constant 0 : i32
    return %c0_i32, %c0_i32_0 : i32, i32
  }
  func.func @transform_10(%arg0: i32, %arg1: i32, %arg2: i32) -> (i32, i32) {
    %c0_i32 = arith.constant 0 : i32
    return %arg0, %arg1 : i32, i32
  }
  func.func @transform_11(%arg0: i32, %arg1: i32, %arg2: i32) -> (i32, i32) {
    %c0_i32 = arith.constant 0 : i32
    return %arg0, %arg1 : i32, i32
  }
  func.func @transform_12(%arg0: i32, %arg1: i32, %arg2: i32) -> (i32, i32) {
    %c0_i32 = arith.constant 0 : i32
    return %arg0, %arg1 : i32, i32
  }
}

module attributes {stable_mosaic.version = 11 : i64} {
  func.func @_linear_kernel(%arg0: i32, %arg1: i32, %arg2: i32, %arg3: memref<16x32xbf16, #tpu.memory_space<vmem>>, %arg4: memref<32x32xbf16, #tpu.memory_space<vmem>>, %arg5: memref<1x32xf32, #tpu.memory_space<vmem>>, %arg6: memref<16x32xf32, #tpu.memory_space<vmem>>, %arg7: memref<16x32xf32, #tpu.memory_space<vmem>>) attributes {dimension_semantics = [#tpu.dimension_semantics<parallel>, #tpu.dimension_semantics<parallel>, #tpu.dimension_semantics<arbitrary>], iteration_bounds = array<i64: 1, 1, 1>, scalar_prefetch = 0 : i64, scratch_operands = 1 : i64, tpu.core_type = #tpu.core_type<tc>, window_params = [{transform_indices = @transform_0, window_bounds = array<i64: 16, 32>}, {transform_indices = @transform_1, window_bounds = array<i64: 32, 32>}, {transform_indices = @transform_2, window_bounds = array<i64: 1, 32>}, {transform_indices = @transform_3, window_bounds = array<i64: 16, 32>}]} {
    %c0_i32 = arith.constant 0 : i32
    %0 = arith.cmpi eq, %arg2, %c0_i32 : i32
    %1 = arith.extui %0 : i1 to i32
    %c0_i32_0 = arith.constant 0 : i32
    %2 = arith.cmpi ne, %1, %c0_i32_0 : i32
    scf.if %2 {
      %cst_10 = arith.constant 0.000000e+00 : f32
      %12 = vector.broadcast %cst_10 : f32 to vector<16x32xf32>
      %c0_11 = arith.constant 0 : index
      %c0_12 = arith.constant 0 : index
      %13 = vector.load %arg7[%c0_11, %c0_12] : memref<16x32xf32, #tpu.memory_space<vmem>>, vector<16x32xf32>
      tpu.vector_store %arg7[%c0_11, %c0_12], %12 {strides = array<i32>} : memref<16x32xf32, #tpu.memory_space<vmem>>, vector<16x32xf32>,
    } else {
    }
    %c0 = arith.constant 0 : index
    %c0_1 = arith.constant 0 : index
    %3 = vector.load %arg7[%c0, %c0_1] : memref<16x32xf32, #tpu.memory_space<vmem>>, vector<16x32xf32>
    %c0_2 = arith.constant 0 : index
    %c0_3 = arith.constant 0 : index
    %4 = vector.load %arg3[%c0_2, %c0_3] : memref<16x32xbf16, #tpu.memory_space<vmem>>, vector<16x32xbf16>
    %c0_4 = arith.constant 0 : index
    %c0_5 = arith.constant 0 : index
    %5 = vector.load %arg4[%c0_4, %c0_5] : memref<32x32xbf16, #tpu.memory_space<vmem>>, vector<32x32xbf16>
    %cst = arith.constant dense<0.000000e+00> : vector<16x32xf32>
    %6 = tpu.matmul %4, %5, %cst {dimension_numbers = #tpu.dot_dimension_numbers<[1], [0], [0], [1], [0, 0, 1, 1], [], []>} : vector<16x32xbf16>, vector<32x32xbf16>, vector<16x32xf32> -> vector<16x32xf32>
    %7 = arith.addf %3, %6 : vector<16x32xf32>
    %c0_6 = arith.constant 0 : index
    %c0_7 = arith.constant 0 : index
    %8 = vector.load %arg7[%c0_6, %c0_7] : memref<16x32xf32, #tpu.memory_space<vmem>>, vector<16x32xf32>
    tpu.vector_store %arg7[%c0_6, %c0_7], %7 {strides = array<i32>} : memref<16x32xf32, #tpu.memory_space<vmem>>, vector<16x32xf32>,
    %c0_i32_8 = arith.constant 0 : i32
    %9 = arith.cmpi eq, %arg2, %c0_i32_8 : i32
    %10 = arith.extui %9 : i1 to i32
    %c0_i32_9 = arith.constant 0 : i32
    %11 = arith.cmpi ne, %10, %c0_i32_9 : i32
    scf.if %11 {
      %c0_10 = arith.constant 0 : index
      %c0_11 = arith.constant 0 : index
      %12 = vector.load %arg7[%c0_10, %c0_11] : memref<16x32xf32, #tpu.memory_space<vmem>>, vector<16x32xf32>
      %c0_12 = arith.constant 0 : index
      %c0_13 = arith.constant 0 : index
      %13 = vector.load %arg5[%c0_12, %c0_13] : memref<1x32xf32, #tpu.memory_space<vmem>>, vector<1x32xf32>
      %14 = vector.broadcast %13 : vector<1x32xf32> to vector<16x32xf32>
      %15 = arith.addf %12, %14 : vector<16x32xf32>
      %c0_14 = arith.constant 0 : index
      %c0_15 = arith.constant 0 : index
      %16 = vector.load %arg6[%c0_14, %c0_15] : memref<16x32xf32, #tpu.memory_space<vmem>>, vector<16x32xf32>
      tpu.vector_store %arg6[%c0_14, %c0_15], %15 {strides = array<i32>} : memref<16x32xf32, #tpu.memory_space<vmem>>, vector<16x32xf32>,
    } else {
    }
    return
  }
  func.func @transform_0(%arg0: i32, %arg1: i32, %arg2: i32) -> (i32, i32) {
    %c0_i32 = arith.constant 0 : i32
    return %arg0, %arg2 : i32, i32
  }
  func.func @transform_1(%arg0: i32, %arg1: i32, %arg2: i32) -> (i32, i32) {
    %c0_i32 = arith.constant 0 : i32
    return %arg2, %arg1 : i32, i32
  }
  func.func @transform_2(%arg0: i32, %arg1: i32, %arg2: i32) -> (i32, i32) {
    %c0_i32 = arith.constant 0 : i32
    %c0_i32_0 = arith.constant 0 : i32
    return %c0_i32, %arg1 : i32, i32
  }
  func.func @transform_3(%arg0: i32, %arg1: i32, %arg2: i32) -> (i32, i32) {
    %c0_i32 = arith.constant 0 : i32
    return %arg0, %arg1 : i32, i32
  }
}

module attributes {stable_mosaic.version = 11 : i64} {
  func.func @_flash_attn_kernel(%arg0: i32, %arg1: i32, %arg2: i32, %arg3: memref<1x8x32xbf16, #tpu.memory_space<vmem>>, %arg4: memref<1x8x32xbf16, #tpu.memory_space<vmem>>, %arg5: memref<1x8x32xbf16, #tpu.memory_space<vmem>>, %arg6: memref<1x8x32xbf16, #tpu.memory_space<vmem>>, %arg7: memref<8x4xf32, #tpu.memory_space<vmem>>, %arg8: memref<8x4xf32, #tpu.memory_space<vmem>>, %arg9: memref<8x32xf32, #tpu.memory_space<vmem>>) attributes {dimension_semantics = [#tpu.dimension_semantics<parallel>, #tpu.dimension_semantics<parallel>, #tpu.dimension_semantics<arbitrary>], iteration_bounds = array<i64: 2, 1, 1>, scalar_prefetch = 0 : i64, scratch_operands = 3 : i64, tpu.core_type = #tpu.core_type<tc>, window_params = [{transform_indices = @transform_0, window_bounds = array<i64: 1, 8, 32>}, {transform_indices = @transform_1, window_bounds = array<i64: 1, 8, 32>}, {transform_indices = @transform_2, window_bounds = array<i64: 1, 8, 32>}, {transform_indices = @transform_3, window_bounds = array<i64: 1, 8, 32>}]} {
    %c0_i32 = arith.constant 0 : i32
    %0 = arith.cmpi eq, %arg2, %c0_i32 : i32
    %1 = arith.extui %0 : i1 to i32
    %c0_i32_0 = arith.constant 0 : i32
    %2 = arith.cmpi ne, %1, %c0_i32_0 : i32
    scf.if %2 {
      %cst = arith.constant 0xFF800000 : f32
      %9 = vector.broadcast %cst : f32 to vector<8x4xf32>
      %c0 = arith.constant 0 : index
      %c0_4 = arith.constant 0 : index
      %10 = vector.load %arg7[%c0, %c0_4] : memref<8x4xf32, #tpu.memory_space<vmem>>, vector<8x4xf32>
      tpu.vector_store %arg7[%c0, %c0_4], %9 {strides = array<i32>} : memref<8x4xf32, #tpu.memory_space<vmem>>, vector<8x4xf32>,
      %cst_5 = arith.constant 0.000000e+00 : f32
      %11 = vector.broadcast %cst_5 : f32 to vector<8x4xf32>
      %c0_6 = arith.constant 0 : index
      %c0_7 = arith.constant 0 : index
      %12 = vector.load %arg8[%c0_6, %c0_7] : memref<8x4xf32, #tpu.memory_space<vmem>>, vector<8x4xf32>
      tpu.vector_store %arg8[%c0_6, %c0_7], %11 {strides = array<i32>} : memref<8x4xf32, #tpu.memory_space<vmem>>, vector<8x4xf32>,
      %cst_8 = arith.constant 0.000000e+00 : f32
      %13 = vector.broadcast %cst_8 : f32 to vector<8x32xf32>
      %c0_9 = arith.constant 0 : index
      %c0_10 = arith.constant 0 : index
      %14 = vector.load %arg9[%c0_9, %c0_10] : memref<8x32xf32, #tpu.memory_space<vmem>>, vector<8x32xf32>
      tpu.vector_store %arg9[%c0_9, %c0_10], %13 {strides = array<i32>} : memref<8x32xf32, #tpu.memory_space<vmem>>, vector<8x32xf32>,
    } else {
    }
    %3 = arith.cmpi sle, %arg2, %arg1 : i32
    %4 = arith.extui %3 : i1 to i32
    %c0_i32_1 = arith.constant 0 : i32
    %5 = arith.cmpi ne, %4, %c0_i32_1 : i32
    scf.if %5 {
      %c0 = arith.constant 0 : index
      %c0_4 = arith.constant 0 : index
      %c0_5 = arith.constant 0 : index
      %9 = vector.load %arg3[%c0, %c0_4, %c0_5] : memref<1x8x32xbf16, #tpu.memory_space<vmem>>, vector<1x8x32xbf16>
      %10 = vector.shape_cast %9 : vector<1x8x32xbf16> to vector<8x32xbf16>
      %c0_6 = arith.constant 0 : index
      %c0_7 = arith.constant 0 : index
      %c0_8 = arith.constant 0 : index
      %11 = vector.load %arg4[%c0_6, %c0_7, %c0_8] : memref<1x8x32xbf16, #tpu.memory_space<vmem>>, vector<1x8x32xbf16>
      %12 = vector.shape_cast %11 : vector<1x8x32xbf16> to vector<8x32xbf16>
      %c0_9 = arith.constant 0 : index
      %c0_10 = arith.constant 0 : index
      %c0_11 = arith.constant 0 : index
      %13 = vector.load %arg5[%c0_9, %c0_10, %c0_11] : memref<1x8x32xbf16, #tpu.memory_space<vmem>>, vector<1x8x32xbf16>
      %14 = vector.shape_cast %13 : vector<1x8x32xbf16> to vector<8x32xbf16>
      %c8_i32 = arith.constant 8 : i32
      %15 = arith.muli %arg1, %c8_i32 : i32
      %16 = tpu.iota {dimensions = array<i32: 0>} : vector<8x8xi32>
      %17 = vector.broadcast %15 : i32 to vector<8x8xi32>
      %18 = arith.addi %17, %16 : vector<8x8xi32>
      %c8_i32_12 = arith.constant 8 : i32
      %19 = arith.muli %arg2, %c8_i32_12 : i32
      %20 = tpu.iota {dimensions = array<i32: 1>} : vector<8x8xi32>
      %21 = vector.broadcast %19 : i32 to vector<8x8xi32>
      %22 = arith.addi %21, %20 : vector<8x8xi32>
      %23 = arith.cmpi sle, %22, %18 : vector<8x8xi32>
      %24 = vector.extract_strided_slice %10 {offsets = [0, 0], sizes = [8, 8], strides = [1, 1]} : vector<8x32xbf16> to vector<8x8xbf16>
      %25 = vector.extract_strided_slice %12 {offsets = [0, 0], sizes = [8, 8], strides = [1, 1]} : vector<8x32xbf16> to vector<8x8xbf16>
      %cst = arith.constant dense<0.000000e+00> : vector<8x8xf32>
      %26 = tpu.matmul %24, %25, %cst {dimension_numbers = #tpu.dot_dimension_numbers<[1], [1], [0], [0], [0, 0, 1, 0], [], []>} : vector<8x8xbf16>, vector<8x8xbf16>, vector<8x8xf32> -> vector<8x8xf32>
      %cst_13 = arith.constant 0.353553385 : f32
      %27 = vector.broadcast %cst_13 : f32 to vector<8x8xf32>
      %28 = arith.mulf %26, %27 : vector<8x8xf32>
      %cst_14 = arith.constant 0xFF800000 : f32
      %29 = vector.broadcast %cst_14 : f32 to vector<8x8xf32>
      %30 = arith.select %23, %28, %29 : vector<8x8xi1>, vector<8x8xf32>
      %c0_15 = arith.constant 0 : index
      %c0_16 = arith.constant 0 : index
      %31 = vector.load %arg7[%c0_15, %c0_16] : memref<8x4xf32, #tpu.memory_space<vmem>>, vector<8x1xf32>
      %cst_17 = arith.constant dense<0xFF800000> : vector<8xf32>
      %32 = vector.multi_reduction <maximumf>, %30, %cst_17 [1] : vector<8x8xf32> to vector<8xf32>
      %33 = vector.shape_cast %32 : vector<8xf32> to vector<8x1xf32>
      %34 = arith.maximumf %31, %33 : vector<8x1xf32>
      %35 = arith.subf %31, %34 : vector<8x1xf32>
      %36 = math.exp %35 : vector<8x1xf32>
      %37 = vector.broadcast %34 : vector<8x1xf32> to vector<8x8xf32>
      %38 = arith.subf %30, %37 : vector<8x8xf32>
      %39 = math.exp %38 : vector<8x8xf32>
      %c0_18 = arith.constant 0 : index
      %c0_19 = arith.constant 0 : index
      %40 = vector.load %arg8[%c0_18, %c0_19] : memref<8x4xf32, #tpu.memory_space<vmem>>, vector<8x1xf32>
      %41 = arith.mulf %36, %40 : vector<8x1xf32>
      %cst_20 = arith.constant dense<0.000000e+00> : vector<8xf32>
      %42 = vector.multi_reduction <add>, %39, %cst_20 [1] : vector<8x8xf32> to vector<8xf32>
      %43 = vector.shape_cast %42 : vector<8xf32> to vector<8x1xf32>
      %44 = arith.addf %41, %43 : vector<8x1xf32>
      %c0_21 = arith.constant 0 : index
      %c0_22 = arith.constant 0 : index
      %45 = vector.load %arg8[%c0_21, %c0_22] : memref<8x4xf32, #tpu.memory_space<vmem>>, vector<8x1xf32>
      tpu.vector_store %arg8[%c0_21, %c0_22], %44 {strides = array<i32>} : memref<8x4xf32, #tpu.memory_space<vmem>>, vector<8x1xf32>,
      %c0_23 = arith.constant 0 : index
      %c0_24 = arith.constant 0 : index
      %46 = vector.load %arg9[%c0_23, %c0_24] : memref<8x32xf32, #tpu.memory_space<vmem>>, vector<8x8xf32>
      %47 = vector.broadcast %36 : vector<8x1xf32> to vector<8x8xf32>
      %48 = arith.mulf %47, %46 : vector<8x8xf32>
      %49 = arith.truncf %39 : vector<8x8xf32> to vector<8x8xbf16>
      %50 = vector.extract_strided_slice %14 {offsets = [0, 0], sizes = [8, 8], strides = [1, 1]} : vector<8x32xbf16> to vector<8x8xbf16>
      %cst_25 = arith.constant dense<0.000000e+00> : vector<8x8xf32>
      %51 = tpu.matmul %49, %50, %cst_25 {dimension_numbers = #tpu.dot_dimension_numbers<[1], [0], [0], [1], [0, 0, 1, 1], [], []>} : vector<8x8xbf16>, vector<8x8xbf16>, vector<8x8xf32> -> vector<8x8xf32>
      %52 = arith.addf %48, %51 : vector<8x8xf32>
      %c0_26 = arith.constant 0 : index
      %c0_27 = arith.constant 0 : index
      %53 = vector.load %arg9[%c0_26, %c0_27] : memref<8x32xf32, #tpu.memory_space<vmem>>, vector<8x8xf32>
      tpu.vector_store %arg9[%c0_26, %c0_27], %52 {strides = array<i32>} : memref<8x32xf32, #tpu.memory_space<vmem>>, vector<8x8xf32>,
      %c0_28 = arith.constant 0 : index
      %c0_29 = arith.constant 0 : index
      %54 = vector.load %arg7[%c0_28, %c0_29] : memref<8x4xf32, #tpu.memory_space<vmem>>, vector<8x1xf32>
      tpu.vector_store %arg7[%c0_28, %c0_29], %34 {strides = array<i32>} : memref<8x4xf32, #tpu.memory_space<vmem>>, vector<8x1xf32>,
      %55 = vector.extract_strided_slice %10 {offsets = [0, 8], sizes = [8, 8], strides = [1, 1]} : vector<8x32xbf16> to vector<8x8xbf16>
      %56 = vector.extract_strided_slice %12 {offsets = [0, 8], sizes = [8, 8], strides = [1, 1]} : vector<8x32xbf16> to vector<8x8xbf16>
      %cst_30 = arith.constant dense<0.000000e+00> : vector<8x8xf32>
      %57 = tpu.matmul %55, %56, %cst_30 {dimension_numbers = #tpu.dot_dimension_numbers<[1], [1], [0], [0], [0, 0, 1, 0], [], []>} : vector<8x8xbf16>, vector<8x8xbf16>, vector<8x8xf32> -> vector<8x8xf32>
      %cst_31 = arith.constant 0.353553385 : f32
      %58 = vector.broadcast %cst_31 : f32 to vector<8x8xf32>
      %59 = arith.mulf %57, %58 : vector<8x8xf32>
      %cst_32 = arith.constant 0xFF800000 : f32
      %60 = vector.broadcast %cst_32 : f32 to vector<8x8xf32>
      %61 = arith.select %23, %59, %60 : vector<8x8xi1>, vector<8x8xf32>
      %c0_33 = arith.constant 0 : index
      %c1 = arith.constant 1 : index
      %62 = vector.load %arg7[%c0_33, %c1] : memref<8x4xf32, #tpu.memory_space<vmem>>, vector<8x1xf32>
      %cst_34 = arith.constant dense<0xFF800000> : vector<8xf32>
      %63 = vector.multi_reduction <maximumf>, %61, %cst_34 [1] : vector<8x8xf32> to vector<8xf32>
      %64 = vector.shape_cast %63 : vector<8xf32> to vector<8x1xf32>
      %65 = arith.maximumf %62, %64 : vector<8x1xf32>
      %66 = arith.subf %62, %65 : vector<8x1xf32>
      %67 = math.exp %66 : vector<8x1xf32>
      %68 = vector.broadcast %65 : vector<8x1xf32> to vector<8x8xf32>
      %69 = arith.subf %61, %68 : vector<8x8xf32>
      %70 = math.exp %69 : vector<8x8xf32>
      %c0_35 = arith.constant 0 : index
      %c1_36 = arith.constant 1 : index
      %71 = vector.load %arg8[%c0_35, %c1_36] : memref<8x4xf32, #tpu.memory_space<vmem>>, vector<8x1xf32>
      %72 = arith.mulf %67, %71 : vector<8x1xf32>
      %cst_37 = arith.constant dense<0.000000e+00> : vector<8xf32>
      %73 = vector.multi_reduction <add>, %70, %cst_37 [1] : vector<8x8xf32> to vector<8xf32>
      %74 = vector.shape_cast %73 : vector<8xf32> to vector<8x1xf32>
      %75 = arith.addf %72, %74 : vector<8x1xf32>
      %c0_38 = arith.constant 0 : index
      %c1_39 = arith.constant 1 : index
      %76 = vector.load %arg8[%c0_38, %c1_39] : memref<8x4xf32, #tpu.memory_space<vmem>>, vector<8x1xf32>
      tpu.vector_store %arg8[%c0_38, %c1_39], %75 {strides = array<i32>} : memref<8x4xf32, #tpu.memory_space<vmem>>, vector<8x1xf32>,
      %c0_40 = arith.constant 0 : index
      %c8 = arith.constant 8 : index
      %77 = vector.load %arg9[%c0_40, %c8] : memref<8x32xf32, #tpu.memory_space<vmem>>, vector<8x8xf32>
      %78 = vector.broadcast %67 : vector<8x1xf32> to vector<8x8xf32>
      %79 = arith.mulf %78, %77 : vector<8x8xf32>
      %80 = arith.truncf %70 : vector<8x8xf32> to vector<8x8xbf16>
      %81 = vector.extract_strided_slice %14 {offsets = [0, 8], sizes = [8, 8], strides = [1, 1]} : vector<8x32xbf16> to vector<8x8xbf16>
      %cst_41 = arith.constant dense<0.000000e+00> : vector<8x8xf32>
      %82 = tpu.matmul %80, %81, %cst_41 {dimension_numbers = #tpu.dot_dimension_numbers<[1], [0], [0], [1], [0, 0, 1, 1], [], []>} : vector<8x8xbf16>, vector<8x8xbf16>, vector<8x8xf32> -> vector<8x8xf32>
      %83 = arith.addf %79, %82 : vector<8x8xf32>
      %c0_42 = arith.constant 0 : index
      %c8_43 = arith.constant 8 : index
      %84 = vector.load %arg9[%c0_42, %c8_43] : memref<8x32xf32, #tpu.memory_space<vmem>>, vector<8x8xf32>
      tpu.vector_store %arg9[%c0_42, %c8_43], %83 {strides = array<i32>} : memref<8x32xf32, #tpu.memory_space<vmem>>, vector<8x8xf32>,
      %c0_44 = arith.constant 0 : index
      %c1_45 = arith.constant 1 : index
      %85 = vector.load %arg7[%c0_44, %c1_45] : memref<8x4xf32, #tpu.memory_space<vmem>>, vector<8x1xf32>
      tpu.vector_store %arg7[%c0_44, %c1_45], %65 {strides = array<i32>} : memref<8x4xf32, #tpu.memory_space<vmem>>, vector<8x1xf32>,
      %86 = vector.extract_strided_slice %10 {offsets = [0, 16], sizes = [8, 8], strides = [1, 1]} : vector<8x32xbf16> to vector<8x8xbf16>
      %87 = vector.extract_strided_slice %12 {offsets = [0, 16], sizes = [8, 8], strides = [1, 1]} : vector<8x32xbf16> to vector<8x8xbf16>
      %cst_46 = arith.constant dense<0.000000e+00> : vector<8x8xf32>
      %88 = tpu.matmul %86, %87, %cst_46 {dimension_numbers = #tpu.dot_dimension_numbers<[1], [1], [0], [0], [0, 0, 1, 0], [], []>} : vector<8x8xbf16>, vector<8x8xbf16>, vector<8x8xf32> -> vector<8x8xf32>
      %cst_47 = arith.constant 0.353553385 : f32
      %89 = vector.broadcast %cst_47 : f32 to vector<8x8xf32>
      %90 = arith.mulf %88, %89 : vector<8x8xf32>
      %cst_48 = arith.constant 0xFF800000 : f32
      %91 = vector.broadcast %cst_48 : f32 to vector<8x8xf32>
      %92 = arith.select %23, %90, %91 : vector<8x8xi1>, vector<8x8xf32>
      %c0_49 = arith.constant 0 : index
      %c2 = arith.constant 2 : index
      %93 = vector.load %arg7[%c0_49, %c2] : memref<8x4xf32, #tpu.memory_space<vmem>>, vector<8x1xf32>
      %cst_50 = arith.constant dense<0xFF800000> : vector<8xf32>
      %94 = vector.multi_reduction <maximumf>, %92, %cst_50 [1] : vector<8x8xf32> to vector<8xf32>
      %95 = vector.shape_cast %94 : vector<8xf32> to vector<8x1xf32>
      %96 = arith.maximumf %93, %95 : vector<8x1xf32>
      %97 = arith.subf %93, %96 : vector<8x1xf32>
      %98 = math.exp %97 : vector<8x1xf32>
      %99 = vector.broadcast %96 : vector<8x1xf32> to vector<8x8xf32>
      %100 = arith.subf %92, %99 : vector<8x8xf32>
      %101 = math.exp %100 : vector<8x8xf32>
      %c0_51 = arith.constant 0 : index
      %c2_52 = arith.constant 2 : index
      %102 = vector.load %arg8[%c0_51, %c2_52] : memref<8x4xf32, #tpu.memory_space<vmem>>, vector<8x1xf32>
      %103 = arith.mulf %98, %102 : vector<8x1xf32>
      %cst_53 = arith.constant dense<0.000000e+00> : vector<8xf32>
      %104 = vector.multi_reduction <add>, %101, %cst_53 [1] : vector<8x8xf32> to vector<8xf32>
      %105 = vector.shape_cast %104 : vector<8xf32> to vector<8x1xf32>
      %106 = arith.addf %103, %105 : vector<8x1xf32>
      %c0_54 = arith.constant 0 : index
      %c2_55 = arith.constant 2 : index
      %107 = vector.load %arg8[%c0_54, %c2_55] : memref<8x4xf32, #tpu.memory_space<vmem>>, vector<8x1xf32>
      tpu.vector_store %arg8[%c0_54, %c2_55], %106 {strides = array<i32>} : memref<8x4xf32, #tpu.memory_space<vmem>>, vector<8x1xf32>,
      %c0_56 = arith.constant 0 : index
      %c16 = arith.constant 16 : index
      %108 = vector.load %arg9[%c0_56, %c16] : memref<8x32xf32, #tpu.memory_space<vmem>>, vector<8x8xf32>
      %109 = vector.broadcast %98 : vector<8x1xf32> to vector<8x8xf32>
      %110 = arith.mulf %109, %108 : vector<8x8xf32>
      %111 = arith.truncf %101 : vector<8x8xf32> to vector<8x8xbf16>
      %112 = vector.extract_strided_slice %14 {offsets = [0, 16], sizes = [8, 8], strides = [1, 1]} : vector<8x32xbf16> to vector<8x8xbf16>
      %cst_57 = arith.constant dense<0.000000e+00> : vector<8x8xf32>
      %113 = tpu.matmul %111, %112, %cst_57 {dimension_numbers = #tpu.dot_dimension_numbers<[1], [0], [0], [1], [0, 0, 1, 1], [], []>} : vector<8x8xbf16>, vector<8x8xbf16>, vector<8x8xf32> -> vector<8x8xf32>
      %114 = arith.addf %110, %113 : vector<8x8xf32>
      %c0_58 = arith.constant 0 : index
      %c16_59 = arith.constant 16 : index
      %115 = vector.load %arg9[%c0_58, %c16_59] : memref<8x32xf32, #tpu.memory_space<vmem>>, vector<8x8xf32>
      tpu.vector_store %arg9[%c0_58, %c16_59], %114 {strides = array<i32>} : memref<8x32xf32, #tpu.memory_space<vmem>>, vector<8x8xf32>,
      %c0_60 = arith.constant 0 : index
      %c2_61 = arith.constant 2 : index
      %116 = vector.load %arg7[%c0_60, %c2_61] : memref<8x4xf32, #tpu.memory_space<vmem>>, vector<8x1xf32>
      tpu.vector_store %arg7[%c0_60, %c2_61], %96 {strides = array<i32>} : memref<8x4xf32, #tpu.memory_space<vmem>>, vector<8x1xf32>,
      %117 = vector.extract_strided_slice %10 {offsets = [0, 24], sizes = [8, 8], strides = [1, 1]} : vector<8x32xbf16> to vector<8x8xbf16>
      %118 = vector.extract_strided_slice %12 {offsets = [0, 24], sizes = [8, 8], strides = [1, 1]} : vector<8x32xbf16> to vector<8x8xbf16>
      %cst_62 = arith.constant dense<0.000000e+00> : vector<8x8xf32>
      %119 = tpu.matmul %117, %118, %cst_62 {dimension_numbers = #tpu.dot_dimension_numbers<[1], [1], [0], [0], [0, 0, 1, 0], [], []>} : vector<8x8xbf16>, vector<8x8xbf16>, vector<8x8xf32> -> vector<8x8xf32>
      %cst_63 = arith.constant 0.353553385 : f32
      %120 = vector.broadcast %cst_63 : f32 to vector<8x8xf32>
      %121 = arith.mulf %119, %120 : vector<8x8xf32>
      %cst_64 = arith.constant 0xFF800000 : f32
      %122 = vector.broadcast %cst_64 : f32 to vector<8x8xf32>
      %123 = arith.select %23, %121, %122 : vector<8x8xi1>, vector<8x8xf32>
      %c0_65 = arith.constant 0 : index
      %c3 = arith.constant 3 : index
      %124 = vector.load %arg7[%c0_65, %c3] : memref<8x4xf32, #tpu.memory_space<vmem>>, vector<8x1xf32>
      %cst_66 = arith.constant dense<0xFF800000> : vector<8xf32>
      %125 = vector.multi_reduction <maximumf>, %123, %cst_66 [1] : vector<8x8xf32> to vector<8xf32>
      %126 = vector.shape_cast %125 : vector<8xf32> to vector<8x1xf32>
      %127 = arith.maximumf %124, %126 : vector<8x1xf32>
      %128 = arith.subf %124, %127 : vector<8x1xf32>
      %129 = math.exp %128 : vector<8x1xf32>
      %130 = vector.broadcast %127 : vector<8x1xf32> to vector<8x8xf32>
      %131 = arith.subf %123, %130 : vector<8x8xf32>
      %132 = math.exp %131 : vector<8x8xf32>
      %c0_67 = arith.constant 0 : index
      %c3_68 = arith.constant 3 : index
      %133 = vector.load %arg8[%c0_67, %c3_68] : memref<8x4xf32, #tpu.memory_space<vmem>>, vector<8x1xf32>
      %134 = arith.mulf %129, %133 : vector<8x1xf32>
      %cst_69 = arith.constant dense<0.000000e+00> : vector<8xf32>
      %135 = vector.multi_reduction <add>, %132, %cst_69 [1] : vector<8x8xf32> to vector<8xf32>
      %136 = vector.shape_cast %135 : vector<8xf32> to vector<8x1xf32>
      %137 = arith.addf %134, %136 : vector<8x1xf32>
      %c0_70 = arith.constant 0 : index
      %c3_71 = arith.constant 3 : index
      %138 = vector.load %arg8[%c0_70, %c3_71] : memref<8x4xf32, #tpu.memory_space<vmem>>, vector<8x1xf32>
      tpu.vector_store %arg8[%c0_70, %c3_71], %137 {strides = array<i32>} : memref<8x4xf32, #tpu.memory_space<vmem>>, vector<8x1xf32>,
      %c0_72 = arith.constant 0 : index
      %c24 = arith.constant 24 : index
      %139 = vector.load %arg9[%c0_72, %c24] : memref<8x32xf32, #tpu.memory_space<vmem>>, vector<8x8xf32>
      %140 = vector.broadcast %129 : vector<8x1xf32> to vector<8x8xf32>
      %141 = arith.mulf %140, %139 : vector<8x8xf32>
      %142 = arith.truncf %132 : vector<8x8xf32> to vector<8x8xbf16>
      %143 = vector.extract_strided_slice %14 {offsets = [0, 24], sizes = [8, 8], strides = [1, 1]} : vector<8x32xbf16> to vector<8x8xbf16>
      %cst_73 = arith.constant dense<0.000000e+00> : vector<8x8xf32>
      %144 = tpu.matmul %142, %143, %cst_73 {dimension_numbers = #tpu.dot_dimension_numbers<[1], [0], [0], [1], [0, 0, 1, 1], [], []>} : vector<8x8xbf16>, vector<8x8xbf16>, vector<8x8xf32> -> vector<8x8xf32>
      %145 = arith.addf %141, %144 : vector<8x8xf32>
      %c0_74 = arith.constant 0 : index
      %c24_75 = arith.constant 24 : index
      %146 = vector.load %arg9[%c0_74, %c24_75] : memref<8x32xf32, #tpu.memory_space<vmem>>, vector<8x8xf32>
      tpu.vector_store %arg9[%c0_74, %c24_75], %145 {strides = array<i32>} : memref<8x32xf32, #tpu.memory_space<vmem>>, vector<8x8xf32>,
      %c0_76 = arith.constant 0 : index
      %c3_77 = arith.constant 3 : index
      %147 = vector.load %arg7[%c0_76, %c3_77] : memref<8x4xf32, #tpu.memory_space<vmem>>, vector<8x1xf32>
      tpu.vector_store %arg7[%c0_76, %c3_77], %127 {strides = array<i32>} : memref<8x4xf32, #tpu.memory_space<vmem>>, vector<8x1xf32>,
    } else {
    }
    %c0_i32_2 = arith.constant 0 : i32
    %6 = arith.cmpi eq, %arg2, %c0_i32_2 : i32
    %7 = arith.extui %6 : i1 to i32
    %c0_i32_3 = arith.constant 0 : i32
    %8 = arith.cmpi ne, %7, %c0_i32_3 : i32
    scf.if %8 {
      %c0 = arith.constant 0 : index
      %c0_4 = arith.constant 0 : index
      %9 = vector.load %arg8[%c0, %c0_4] : memref<8x4xf32, #tpu.memory_space<vmem>>, vector<8x4xf32>
      %10 = tpu.reciprocal %9 {approx = true} : vector<8x4xf32> -> vector<8x4xf32>
      %11 = vector.extract_strided_slice %10 {offsets = [0, 0], sizes = [8, 1], strides = [1, 1]} : vector<8x4xf32> to vector<8x1xf32>
      %12 = vector.shape_cast %11 : vector<8x1xf32> to vector<8x1xf32>
      %13 = vector.broadcast %12 : vector<8x1xf32> to vector<8x8xf32>
      %14 = vector.extract_strided_slice %10 {offsets = [0, 1], sizes = [8, 1], strides = [1, 1]} : vector<8x4xf32> to vector<8x1xf32>
      %15 = vector.shape_cast %14 : vector<8x1xf32> to vector<8x1xf32>
      %16 = vector.broadcast %15 : vector<8x1xf32> to vector<8x8xf32>
      %17 = vector.extract_strided_slice %10 {offsets = [0, 2], sizes = [8, 1], strides = [1, 1]} : vector<8x4xf32> to vector<8x1xf32>
      %18 = vector.shape_cast %17 : vector<8x1xf32> to vector<8x1xf32>
      %19 = vector.broadcast %18 : vector<8x1xf32> to vector<8x8xf32>
      %20 = vector.extract_strided_slice %10 {offsets = [0, 3], sizes = [8, 1], strides = [1, 1]} : vector<8x4xf32> to vector<8x1xf32>
      %21 = vector.shape_cast %20 : vector<8x1xf32> to vector<8x1xf32>
      %22 = vector.broadcast %21 : vector<8x1xf32> to vector<8x8xf32>
      %23 = tpu.concatenate %13, %16, %19, %22 in 1 : vector<8x8xf32>, vector<8x8xf32>, vector<8x8xf32>, vector<8x8xf32> -> vector<8x32xf32>
      %c0_5 = arith.constant 0 : index
      %c0_6 = arith.constant 0 : index
      %24 = vector.load %arg9[%c0_5, %c0_6] : memref<8x32xf32, #tpu.memory_space<vmem>>, vector<8x32xf32>
      %25 = arith.mulf %24, %23 : vector<8x32xf32>
      %26 = arith.truncf %25 : vector<8x32xf32> to vector<8x32xbf16>
      %c0_7 = arith.constant 0 : index
      %c0_8 = arith.constant 0 : index
      %c0_9 = arith.constant 0 : index
      %27 = vector.load %arg6[%c0_7, %c0_8, %c0_9] : memref<1x8x32xbf16, #tpu.memory_space<vmem>>, vector<1x8x32xbf16>
      %28 = vector.shape_cast %27 : vector<1x8x32xbf16> to vector<8x32xbf16>
      %29 = vector.shape_cast %26 : vector<8x32xbf16> to vector<1x8x32xbf16>
      tpu.vector_store %arg6[%c0_7, %c0_8, %c0_9], %29 {strides = array<i32>} : memref<1x8x32xbf16, #tpu.memory_space<vmem>>, vector<1x8x32xbf16>,
    } else {
    }
    return
  }
  func.func @transform_0(%arg0: i32, %arg1: i32, %arg2: i32) -> (i32, i32, i32) {
    %c0_i32 = arith.constant 0 : i32
    %c0_i32_0 = arith.constant 0 : i32
    return %arg0, %arg1, %c0_i32 : i32, i32, i32
  }
  func.func @transform_1(%arg0: i32, %arg1: i32, %arg2: i32) -> (i32, i32, i32) {
    %0 = arith.minsi %arg2, %arg1 : i32
    %c0_i32 = arith.constant 0 : i32
    %c0_i32_0 = arith.constant 0 : i32
    return %arg0, %0, %c0_i32 : i32, i32, i32
  }
  func.func @transform_2(%arg0: i32, %arg1: i32, %arg2: i32) -> (i32, i32, i32) {
    %0 = arith.minsi %arg2, %arg1 : i32
    %c0_i32 = arith.constant 0 : i32
    %c0_i32_0 = arith.constant 0 : i32
    return %arg0, %0, %c0_i32 : i32, i32, i32
  }
  func.func @transform_3(%arg0: i32, %arg1: i32, %arg2: i32) -> (i32, i32, i32) {
    %c0_i32 = arith.constant 0 : i32
    %c0_i32_0 = arith.constant 0 : i32
    return %arg0, %arg1, %c0_i32 : i32, i32, i32
  }
}

</mosaic_0001>

<llo_original>
// kernel: tile.13
$region0: #{tile.13}
  #allocation0 [shape = 's32[1]{0}', space=sflag, size = 0x4, scoped, tag = 'scoped memory for tile.13']
  %s0 = inlined_call_operand.vmem [shape: f32[8,8], index: 0, kind: input, shape index: {}]
  %s1 = inlined_call_operand.vmem [shape: f32[2,8,4,8], index: 1, kind: output, shape index: {}]
  // Predicated region
  $region2: #{tile.13} parent=0 // pred_check
    _
  $region3: #{tile.13} parent=0 // pred_check_branch
    %3 = sbr.rel (0) target = $region5
  $region4: #{tile.13} parent=0 // pred_region
    _
  $region5: #{tile.13} parent=0 // pred_fallthru
    _
  %v4 = vld [vmem:[%s0] ss:$0 sm:$0xff]
  %5 = vst [vmem:[%s1] sm:$0xf] %v4
  %s6 = scalar_lea.vmem %s1, 32
  %7 = vst [vmem:[%s6] sm:$0xf] %v4
  %s8 = scalar_lea.vmem %s0, 1
  %v9 = vld [vmem:[%s8] ss:$0 sm:$0xff]
  %s10 = scalar_lea.vmem %s1, 4
  %11 = vst [vmem:[%s10] sm:$0xf] %v9
  %s12 = scalar_lea.vmem %s1, 36
  %13 = vst [vmem:[%s12] sm:$0xf] %v9
  %s14 = scalar_lea.vmem %s0, 2
  %v15 = vld [vmem:[%s14] ss:$0 sm:$0xff]
  %s16 = scalar_lea.vmem %s1, 8
  %17 = vst [vmem:[%s16] sm:$0xf] %v15
  %s18 = scalar_lea.vmem %s1, 40
  %19 = vst [vmem:[%s18] sm:$0xf] %v15
  %s20 = scalar_lea.vmem %s0, 3
  %v21 = vld [vmem:[%s20] ss:$0 sm:$0xff]
  %s22 = scalar_lea.vmem %s1, 12
  %23 = vst [vmem:[%s22] sm:$0xf] %v21
  %s24 = scalar_lea.vmem %s1, 44
  %25 = vst [vmem:[%s24] sm:$0xf] %v21
  %s26 = scalar_lea.vmem %s0, 4
  %v27 = vld [vmem:[%s26] ss:$0 sm:$0xff]
  %s28 = scalar_lea.vmem %s1, 16
  %29 = vst [vmem:[%s28] sm:$0xf] %v27
  %s30 = scalar_lea.vmem %s1, 48
  %31 = vst [vmem:[%s30] sm:$0xf] %v27
  %s32 = scalar_lea.vmem %s0, 5
  %v33 = vld [vmem:[%s32] ss:$0 sm:$0xff]
  %s34 = scalar_lea.vmem %s1, 20
  %35 = vst [vmem:[%s34] sm:$0xf] %v33
  %s36 = scalar_lea.vmem %s1, 52
  %37 = vst [vmem:[%s36] sm:$0xf] %v33
  %s38 = scalar_lea.vmem %s0, 6
  %v39 = vld [vmem:[%s38] ss:$0 sm:$0xff]
  %s40 = scalar_lea.vmem %s1, 24
  %41 = vst [vmem:[%s40] sm:$0xf] %v39
  %s42 = scalar_lea.vmem %s1, 56
  %43 = vst [vmem:[%s42] sm:$0xf] %v39
  %s44 = scalar_lea.vmem %s0, 7
  %v45 = vld [vmem:[%s44] ss:$0 sm:$0xff]
  %s46 = scalar_lea.vmem %s1, 28
  %47 = vst [vmem:[%s46] sm:$0xf] %v45
  %s48 = scalar_lea.vmem %s1, 60
  %49 = vst [vmem:[%s48] sm:$0xf] %v45

// kernel: tile.14
$region0: #{tile.14}
  %s0 = inlined_call_operand.vmem [shape: f32[2,8,4,8], index: 0, kind: input, shape index: {}]
  %s1 = inlined_call_operand.vmem [shape: f32[16,32], index: 1, kind: output, shape index: {}]
  $region1: #{tile.14} parent=0
    #allocation0 [shape = 'u8[65536]{0}', space=vmem, size = 0x10000, scoped, tag = 'scoped mem for input reshape']
    %s3 = sshllo.u32 0, 4
    %s4 = smul.addr 4, 15
    %s5 = scalar_lea.vmem %s0, %s4
    %v6 = vld [vmem:[%s5] sm:%s3]
    %s7 = scalar_lea.vmem [#allocation0], 120
    %8 = vst [vmem:[%s7] sm:%s3] %v6
    %s9 = smul.addr 4, 14
    %s10 = scalar_lea.vmem %s0, %s9
    %v11 = vld [vmem:[%s10] sm:%s3]
    %s12 = scalar_lea.vmem [#allocation0], 112
    %13 = vst [vmem:[%s12] sm:%s3] %v11
    %s14 = smul.addr 4, 13
    %s15 = scalar_lea.vmem %s0, %s14
    %v16 = vld [vmem:[%s15] sm:%s3]
    %s17 = scalar_lea.vmem [#allocation0], 104
    %18 = vst [vmem:[%s17] sm:%s3] %v16
    %s19 = smul.addr 4, 12
    %s20 = scalar_lea.vmem %s0, %s19
    %v21 = vld [vmem:[%s20] sm:%s3]
    %s22 = scalar_lea.vmem [#allocation0], 96
    %23 = vst [vmem:[%s22] sm:%s3] %v21
    %s24 = smul.addr 4, 11
    %s25 = scalar_lea.vmem %s0, %s24
    %v26 = vld [vmem:[%s25] sm:%s3]
    %s27 = scalar_lea.vmem [#allocation0], 88
    %28 = vst [vmem:[%s27] sm:%s3] %v26
    %s29 = smul.addr 4, 10
    %s30 = scalar_lea.vmem %s0, %s29
    %v31 = vld [vmem:[%s30] sm:%s3]
    %s32 = scalar_lea.vmem [#allocation0], 80
    %33 = vst [vmem:[%s32] sm:%s3] %v31
    %s34 = smul.addr 4, 9
    %s35 = scalar_lea.vmem %s0, %s34
    %v36 = vld [vmem:[%s35] sm:%s3]
    %s37 = scalar_lea.vmem [#allocation0], 72
    %38 = vst [vmem:[%s37] sm:%s3] %v36
    %s39 = smul.addr 4, 8
    %s40 = scalar_lea.vmem %s0, %s39
    %v41 = vld [vmem:[%s40] sm:%s3]
    %s42 = scalar_lea.vmem [#allocation0], 64
    %43 = vst [vmem:[%s42] sm:%s3] %v41
    %s44 = smul.addr 4, 7
    %s45 = scalar_lea.vmem %s0, %s44
    %v46 = vld [vmem:[%s45] sm:%s3]
    %s47 = scalar_lea.vmem [#allocation0], 56
    %48 = vst [vmem:[%s47] sm:%s3] %v46
    %s49 = smul.addr 4, 6
    %s50 = scalar_lea.vmem %s0, %s49
    %v51 = vld [vmem:[%s50] sm:%s3]
    %s52 = scalar_lea.vmem [#allocation0], 48
    %53 = vst [vmem:[%s52] sm:%s3] %v51
    %s54 = smul.addr 4, 5
    %s55 = scalar_lea.vmem %s0, %s54
    %v56 = vld [vmem:[%s55] sm:%s3]
    %s57 = scalar_lea.vmem [#allocation0], 40
    %58 = vst [vmem:[%s57] sm:%s3] %v56
    %s59 = smul.addr 4, 4
    %s60 = scalar_lea.vmem %s0, %s59
    %v61 = vld [vmem:[%s60] sm:%s3]
    %s62 = scalar_lea.vmem [#allocation0], 32
    %63 = vst [vmem:[%s62] sm:%s3] %v61
    %s64 = smul.addr 4, 3
    %s65 = scalar_lea.vmem %s0, %s64
    %v66 = vld [vmem:[%s65] sm:%s3]
    %s67 = scalar_lea.vmem [#allocation0], 24
    %68 = vst [vmem:[%s67] sm:%s3] %v66
    %s69 = smul.addr 4, 2
    %s70 = scalar_lea.vmem %s0, %s69
    %v71 = vld [vmem:[%s70] sm:%s3]
    %s72 = scalar_lea.vmem [#allocation0], 16
    %73 = vst [vmem:[%s72] sm:%s3] %v71
    %s74 = scalar_lea.vmem %s0, 4
    %v75 = vld [vmem:[%s74] sm:%s3]
    %s76 = scalar_lea.vmem [#allocation0], 8
    %77 = vst [vmem:[%s76] sm:%s3] %v75
    %v78 = vld [vmem:[%s0] sm:%s3]
    %79 = vst [vmem:[#allocation0] sm:%s3] %v78
    %v80 = vld [vmem:[#allocation0] ss:$8 sm:$0xf]
    %v81 = vld [vmem:[#allocation0] ss:$8 sm:$0xf0]
    %vm82 = vcmask 1047556
    %v83 = vsel %vm82, %v81, %v80
    %vm84 = vcmask 64512
    %85 = vst.msk [vmem:[%s1] sm:$0xff] %vm84, %v83
    %s86 = scalar_lea.vmem [#allocation0], 64
    %v87 = vld [vmem:[%s86] ss:$8 sm:$0xf]
    %s88 = scalar_lea.vmem [#allocation0], 64
    %v89 = vld [vmem:[%s88] ss:$8 sm:$0xf0]
    %vm90 = vcmask 1047556
    %v91 = vsel %vm90, %v89, %v87
    %vm92 = vcmask 64512
    %s93 = scalar_lea.vmem %s1, 8
    %94 = vst.msk [vmem:[%s93] sm:$0xff] %vm92, %v91
    %s95 = scalar_lea.vmem [#allocation0], 3
    %v96 = vld [vmem:[%s95] ss:$8 sm:$0xf]
    %s97 = scalar_lea.vmem [#allocation0], 3
    %v98 = vld [vmem:[%s97] ss:$8 sm:$0xf0]
    %vm99 = vcmask 1047556
    %v100 = vsel %vm99, %v98, %v96
    %101 = vrot.lane.b32.xlu0 %v100, 24
    %v102 = vpop.permute.xlu0 %101
    %vm103 = vcmask 261312
    %104 = vst.msk [vmem:[%s1] sm:$0xff] %vm103, %v102
    %s105 = scalar_lea.vmem [#allocation0], 67
    %v106 = vld [vmem:[%s105] ss:$8 sm:$0xf]
    %s107 = scalar_lea.vmem [#allocation0], 67
    %v108 = vld [vmem:[%s107] ss:$8 sm:$0xf0]
    %vm109 = vcmask 1047556
    %v110 = vsel %vm109, %v108, %v106
    %111 = vrot.lane.b32.xlu0 %v110, 24
    %v112 = vpop.permute.xlu0 %111
    %vm113 = vcmask 261312
    %s114 = scalar_lea.vmem %s1, 8
    %115 = vst.msk [vmem:[%s114] sm:$0xff] %vm113, %v112
    %s116 = scalar_lea.vmem [#allocation0], 2
    %v117 = vld [vmem:[%s116] ss:$8 sm:$0xf]
    %s118 = scalar_lea.vmem [#allocation0], 2
    %v119 = vld [vmem:[%s118] ss:$8 sm:$0xf0]
    %vm120 = vcmask 1047556
    %v121 = vsel %vm120, %v119, %v117
    %122 = vrot.lane.b32.xlu0 %v121, 16
    %v123 = vpop.permute.xlu0 %122
    %vm124 = vcmask 195712
    %125 = vst.msk [vmem:[%s1] sm:$0xff] %vm124, %v123
    %s126 = scalar_lea.vmem [#allocation0], 66
    %v127 = vld [vmem:[%s126] ss:$8 sm:$0xf]
    %s128 = scalar_lea.vmem [#allocation0], 66
    %v129 = vld [vmem:[%s128] ss:$8 sm:$0xf0]
    %vm130 = vcmask 1047556
    %v131 = vsel %vm130, %v129, %v127
    %132 = vrot.lane.b32.xlu0 %v131, 16
    %v133 = vpop.permute.xlu0 %132
    %vm134 = vcmask 195712
    %s135 = scalar_lea.vmem %s1, 8
    %136 = vst.msk [vmem:[%s135] sm:$0xff] %vm134, %v133
    %s137 = scalar_lea.vmem [#allocation0], 1
    %v138 = vld [vmem:[%s137] ss:$8 sm:$0xf]
    %s139 = scalar_lea.vmem [#allocation0], 1
    %v140 = vld [vmem:[%s139] ss:$8 sm:$0xf0]
    %vm141 = vcmask 1047556
    %v142 = vsel %vm141, %v140, %v138
    %143 = vrot.lane.b32.xlu0 %v142, 8
    %v144 = vpop.permute.xlu0 %143
    %vm145 = vcmask 130112
    %146 = vst.msk [vmem:[%s1] sm:$0xff] %vm145, %v144
    %s147 = scalar_lea.vmem [#allocation0], 65
    %v148 = vld [vmem:[%s147] ss:$8 sm:$0xf]
    %s149 = scalar_lea.vmem [#allocation0], 65
    %v150 = vld [vmem:[%s149] ss:$8 sm:$0xf0]
    %vm151 = vcmask 1047556
    %v152 = vsel %vm151, %v150, %v148
    %153 = vrot.lane.b32.xlu0 %v152, 8
    %v154 = vpop.permute.xlu0 %153
    %vm155 = vcmask 130112
    %s156 = scalar_lea.vmem %s1, 8
    %157 = vst.msk [vmem:[%s156] sm:$0xff] %vm155, %v154

// kernel: mha_forward.5
$region0: #{mha_forward.5}
  #allocation0 [shape = 'u32[]', space=smem, size = 0x4, offset = 0x4, fixed_abs, tag = 'smem constant byte address 0x4 - core index']
  #allocation1 [shape = 'u32[144,128]{1,0:T(1,128)}', space=vmem, size = 0x12000, scoped, tag = 'internal scratch']
  #allocation2 [shape = 'f32[16,32]{1,0:T(8,128)}', space=vmem, size = 0x2000, scoped, tag = 'scratch operand']
  %s0 = inlined_call_operand.vmem [shape: bf16[16,32], index: 0, kind: input, shape index: {}]
  %s1 = inlined_call_operand.vmem [shape: bf16[32,32], index: 1, kind: input, shape index: {}]
  %s2 = inlined_call_operand.vmem [shape: f32[1,32], index: 2, kind: input, shape index: {}]
  %s3 = inlined_call_operand.hbm [shape: f32[16,32], index: 3, kind: output, shape index: {}]
  %s4 = sld [smem:[#allocation0]]
  $region30: #{mha_forward.5} parent=0
    _
  %s6 = ssub.s32 1, %s4
  %s7 = scalar_select 0, %s6, %s4
  $region1: #{mha_forward.5} parent=0
    #allocation3 [shape = 'u8[8192]{0}', space=vmem, size = 0x2000, scoped, tag = 'output window, operand 0, single buffered']
    #allocation4 [shape = 's32[1]{0}', space=sflag, size = 0x4, scoped, tag = 'scoped memory for mha_forward.5']
    %8 = vsyncpa [#allocation4], 0
    // Predicated region
    $region2: #{mha_forward.5} parent=1 // pred_check
      _
    $region3: #{mha_forward.5} parent=1 // pred_check_branch
      %10 = sbr.rel (0) target = $region5
    $region4: #{mha_forward.5} parent=1 // pred_region
      _
    $region5: #{mha_forward.5} parent=1 // pred_fallthru
      _
    // Predicated region
    $region6: #{mha_forward.5} parent=1 // pred_check
      _
    $region7: #{mha_forward.5} parent=1 // pred_check_branch
      %12 = sbr.rel (0) target = $region9
    $region8: #{mha_forward.5} parent=1 // pred_region
      _
    $region9: #{mha_forward.5} parent=1 // pred_fallthru
      _
    // Predicated region
    $region10: #{mha_forward.5} parent=1 // pred_check
      _
    $region11: #{mha_forward.5} parent=1 // pred_check_branch
      %14 = sbr.rel (0) target = $region13
    $region12: #{mha_forward.5} parent=1 // pred_region
      _
    $region13: #{mha_forward.5} parent=1 // pred_fallthru
      _
    %p16 = scmp.eq.s32.totalorder 0, 0
    // Predicated region
    $region14: #{mha_forward.5} parent=1 // pred_check
      %p17 = pneg %p16
    $region15: #{mha_forward.5} parent=1 // pred_check_branch
      %19 = sbr.rel (%p17) target = $region17
    $region16: #{mha_forward.5} parent=1 // pred_region
      %vm20 = vcmask 261120
      %21 = vst.msk [vmem:[#allocation2] sm:$0xff] %vm20, 0.0
      %22 = vst.msk [vmem:[#allocation2 + $0x8] sm:$0xff] %vm20, 0.0
    $region17: #{mha_forward.5} parent=1 // pred_fallthru
      _
    %v23 = vld [vmem:[#allocation2] sm:$0xff]
    %v24 = vld [vmem:[#allocation2 + $0x8] sm:$0xff]
    %v25 = vld [vmem:[%s0] sm:$0xf]
    %v26 = vld [vmem:[%s0 + $0x4] sm:$0xf]
    %v27 = vld [vmem:[%s1] sm:$0xf]
    %v28 = vld [vmem:[%s1 + $0x4] sm:$0xf]
    %v29 = vld [vmem:[%s1 + $0x8] sm:$0xf]
    %v30 = vld [vmem:[%s1 + $0xc] sm:$0xf]
    %v33 = vunpack.c.l.b16 %v25
    %v34 = vunpack.c.l.b16 %v26
    %v35 = vpack.c.b16 %v34, %v33
    %v40 = vunpack.c.l.b16 %v27
    %v41 = vunpack.c.l.b16 %v28
    %v42 = vunpack.c.l.b16 %v29
    %v43 = vunpack.c.l.b16 %v30
    %v44 = vpack.c.b16 %v41, %v40
    %v45 = vpack.c.b16 %v43, %v42
    %vm48 = vcmask 261120
    %v50 = vsel %vm48, %v35, 0
    %52 = vmatprep.subr.bf16.mxu0 0
    %53 = vmatpush1.bf16.msra.mxu0 %v44
    %54 = vmatprep.subr.bf16.mxu0 0
    %55 = vmatpush1.bf16.msra.mxu0 %v45
    %56 = vmatprep.subr.bf16.mxu0 0
    %57 = vmatpush1.bf16.msra.mxu0 0
    %58 = vmatprep.subr.bf16.mxu0 0
    %59 = vmatpush1.bf16.msra.mxu0 0
    %60 = vmatprep.subr.bf16.mxu0 0
    %61 = vmatpush1.bf16.msra.mxu0 0
    %62 = vmatprep.subr.bf16.mxu0 0
    %63 = vmatpush1.bf16.msra.mxu0 0
    %64 = vmatprep.subr.bf16.mxu0 0
    %65 = vmatpush1.bf16.msra.mxu0 0
    %66 = vmatprep.subr.bf16.mxu0 0
    %67 = vmatpush1.bf16.msra.mxu0 0
    %68 = vmatprep.subr.bf16.mxu0 0
    %69 = vmatpush1.bf16.msra.mxu0 0
    %70 = vmatprep.subr.bf16.mxu0 0
    %71 = vmatpush1.bf16.msra.mxu0 0
    %72 = vmatprep.subr.bf16.mxu0 0
    %73 = vmatpush1.bf16.msra.mxu0 0
    %74 = vmatprep.subr.bf16.mxu0 0
    %75 = vmatpush1.bf16.msra.mxu0 0
    %76 = vmatprep.subr.bf16.mxu0 0
    %77 = vmatpush1.bf16.msra.mxu0 0
    %78 = vmatprep.subr.bf16.mxu0 0
    %79 = vmatpush1.bf16.msra.mxu0 0
    %80 = vmatprep.subr.bf16.mxu0 0
    %81 = vmatpush1.bf16.msra.mxu0 0
    %82 = vmatprep.subr.bf16.mxu0 0
    %83 = vmatpush1.bf16.msra.mxu0 0
    %84 = vmatprep.mubr.bf16.mxu0 0
    %85 = vmatmul.mubr.bf16.gmra.mrb[0].mxu0 %v50
    %v86 = vpop.f32.mrb[0].mxu0
    %v87 = vadd.f32 0.0, %v86
    %v88 = vpop.f32.mrb[0].mxu0
    %v89 = vpop.f32.mrb[0].mxu0
    %v90 = vadd.f32 0.0, %v89
    %v91 = vpop.f32.mrb[0].mxu0
    %92 = vdwg.mxu0
    %v93 = vadd.f32 %v23, %v87
    %v94 = vadd.f32 %v24, %v90
    %95 = vst.msk [vmem:[#allocation2] sm:$0xff] %vm48, %v93
    %96 = vst.msk [vmem:[#allocation2 + $0x8] sm:$0xff] %vm48, %v94
    // Predicated region
    $region18: #{mha_forward.5} parent=1 // pred_check
      %p97 = pneg %p16
    $region19: #{mha_forward.5} parent=1 // pred_check_branch
      %99 = sbr.rel (%p97) target = $region21
    $region20: #{mha_forward.5} parent=1 // pred_region
      %v100 = vld [vmem:[#allocation2] sm:$0xff]
      %v101 = vld [vmem:[#allocation2 + $0x8] sm:$0xff]
      %v102 = vld [vmem:[%s2] sm:$0x1]
      %v104 = vlaneseq
      %v105 = vshrl.u32 %v104, 7
      %v106 = vsub.s32 0, %v105
      %v107 = vrot.slane %v102, %v106
      %v109 = vadd.f32 %v100, %v107
      %v110 = vadd.f32 %v101, %v107
      %111 = vst.msk [vmem:[#allocation3] sm:$0xff] %vm48, %v109
      %112 = vst.msk [vmem:[#allocation3 + $0x8] sm:$0xff] %vm48, %v110
    $region21: #{mha_forward.5} parent=1 // pred_fallthru
      _
    // Predicated region
    $region22: #{mha_forward.5} parent=1 // pred_check
      _
    $region23: #{mha_forward.5} parent=1 // pred_check_branch
      %114 = sbr.rel (0) target = $region25
    $region24: #{mha_forward.5} parent=1 // pred_region
      %s116 = ssub.s32 256, 256
      %117 = vsyncadd [#allocation4], %s116
      %s118 = sshll.u32 [#allocation3], 4
      %s119 = int_to_ptr.vmem [resolvable:$true] %s118
      %124 = dma.vmem_to_hbm [thread:$0]  %s119, 256, %s3, [#allocation4], 128, 128, 8
    $region25: #{mha_forward.5} parent=1 // pred_fallthru
      _
    // Predicated region
    $region26: #{mha_forward.5} parent=1 // pred_check
      _
    $region27: #{mha_forward.5} parent=1 // pred_check_branch
      %126 = sbr.rel (0) target = $region29
    $region28: #{mha_forward.5} parent=1 // pred_region
      %127 = dma.done [#allocation4], 256
    $region29: #{mha_forward.5} parent=1 // pred_fallthru
      _
    %128 = vsyncpa [#allocation4], 1

// kernel: mha_forward.3
$region0: #{mha_forward.3}
  #allocation0 [shape = 'u32[]', space=smem, size = 0x4, offset = 0x4, fixed_abs, tag = 'smem constant byte address 0x4 - core index']
  #allocation1 [shape = 'u32[144,128]{1,0:T(1,128)}', space=vmem, size = 0x12000, scoped, tag = 'internal scratch']
  #allocation2 [shape = 'f32[16,32]{1,0:T(8,128)}', space=vmem, size = 0x2000, scoped, tag = 'scratch operand']
  #allocation3 [shape = 'f32[16,32]{1,0:T(8,128)}', space=vmem, size = 0x2000, scoped, tag = 'scratch operand']
  #allocation4 [shape = 'f32[16,32]{1,0:T(8,128)}', space=vmem, size = 0x2000, scoped, tag = 'scratch operand']
  %s0 = inlined_call_operand.vmem [shape: bf16[16,32], index: 0, kind: input, shape index: {}]
  %s1 = inlined_call_operand.vmem [shape: bf16[32,32], index: 1, kind: input, shape index: {}]
  %s2 = inlined_call_operand.vmem [shape: bf16[32,32], index: 2, kind: input, shape index: {}]
  %s3 = inlined_call_operand.vmem [shape: bf16[32,32], index: 3, kind: input, shape index: {}]
  %s4 = inlined_call_operand.vmem [shape: f32[1,32], index: 4, kind: input, shape index: {}]
  %s5 = inlined_call_operand.vmem [shape: f32[1,32], index: 5, kind: input, shape index: {}]
  %s6 = inlined_call_operand.vmem [shape: f32[1,32], index: 6, kind: input, shape index: {}]
  %s7 = inlined_call_operand.vmem [shape: f32[16,32], index: 7, kind: input, shape index: {}]
  %s8 = inlined_call_operand.vmem [shape: f32[16,32], index: 8, kind: input, shape index: {}]
  %s9 = inlined_call_operand.vmem [shape: bf16[32,32], index: 9, kind: input, shape index: {}]
  %s10 = inlined_call_operand.vmem [shape: bf16[16,32], index: 10, kind: output, shape index: {0}]
  %s11 = inlined_call_operand.vmem [shape: bf16[16,32], index: 11, kind: output, shape index: {1}]
  %s12 = inlined_call_operand.vmem [shape: bf16[16,32], index: 12, kind: output, shape index: {2}]
  %13 = xla_tuple %s10, %s11, %s12
  %s14 = sld [smem:[#allocation0]]
  $region74: #{mha_forward.3} parent=0
    _
  %s16 = ssub.s32 1, %s14
  %s17 = scalar_select 0, %s16, %s14
  // Predicated region
  $region2: #{mha_forward.3} parent=0 // pred_check
    _
  $region3: #{mha_forward.3} parent=0 // pred_check_branch
    %19 = sbr.rel (0) target = $region5
  $region4: #{mha_forward.3} parent=0 // pred_region
    _
  $region5: #{mha_forward.3} parent=0 // pred_fallthru
    _
  // Predicated region
  $region6: #{mha_forward.3} parent=0 // pred_check
    _
  $region7: #{mha_forward.3} parent=0 // pred_check_branch
    %21 = sbr.rel (0) target = $region9
  $region8: #{mha_forward.3} parent=0 // pred_region
    _
  $region9: #{mha_forward.3} parent=0 // pred_fallthru
    _
  // Predicated region
  $region10: #{mha_forward.3} parent=0 // pred_check
    _
  $region11: #{mha_forward.3} parent=0 // pred_check_branch
    %23 = sbr.rel (0) target = $region13
  $region12: #{mha_forward.3} parent=0 // pred_region
    _
  $region13: #{mha_forward.3} parent=0 // pred_fallthru
    _
  // Predicated region
  $region14: #{mha_forward.3} parent=0 // pred_check
    _
  $region15: #{mha_forward.3} parent=0 // pred_check_branch
    %25 = sbr.rel (0) target = $region17
  $region16: #{mha_forward.3} parent=0 // pred_region
    _
  $region17: #{mha_forward.3} parent=0 // pred_fallthru
    _
  // Predicated region
  $region18: #{mha_forward.3} parent=0 // pred_check
    _
  $region19: #{mha_forward.3} parent=0 // pred_check_branch
    %27 = sbr.rel (0) target = $region21
  $region20: #{mha_forward.3} parent=0 // pred_region
    _
  $region21: #{mha_forward.3} parent=0 // pred_fallthru
    _
  // Predicated region
  $region22: #{mha_forward.3} parent=0 // pred_check
    _
  $region23: #{mha_forward.3} parent=0 // pred_check_branch
    %29 = sbr.rel (0) target = $region25
  $region24: #{mha_forward.3} parent=0 // pred_region
    _
  $region25: #{mha_forward.3} parent=0 // pred_fallthru
    _
  // Predicated region
  $region26: #{mha_forward.3} parent=0 // pred_check
    _
  $region27: #{mha_forward.3} parent=0 // pred_check_branch
    %31 = sbr.rel (0) target = $region29
  $region28: #{mha_forward.3} parent=0 // pred_region
    _
  $region29: #{mha_forward.3} parent=0 // pred_fallthru
    _
  // Predicated region
  $region30: #{mha_forward.3} parent=0 // pred_check
    _
  $region31: #{mha_forward.3} parent=0 // pred_check_branch
    %33 = sbr.rel (0) target = $region33
  $region32: #{mha_forward.3} parent=0 // pred_region
    _
  $region33: #{mha_forward.3} parent=0 // pred_fallthru
    _
  // Predicated region
  $region34: #{mha_forward.3} parent=0 // pred_check
    _
  $region35: #{mha_forward.3} parent=0 // pred_check_branch
    %35 = sbr.rel (0) target = $region37
  $region36: #{mha_forward.3} parent=0 // pred_region
    _
  $region37: #{mha_forward.3} parent=0 // pred_fallthru
    _
  // Predicated region
  $region38: #{mha_forward.3} parent=0 // pred_check
    _
  $region39: #{mha_forward.3} parent=0 // pred_check_branch
    %37 = sbr.rel (0) target = $region41
  $region40: #{mha_forward.3} parent=0 // pred_region
    _
  $region41: #{mha_forward.3} parent=0 // pred_fallthru
    _
  %p39 = scmp.eq.s32.totalorder 0, 0
  // Predicated region
  $region42: #{mha_forward.3} parent=0 // pred_check
    %p40 = pneg %p39
  $region43: #{mha_forward.3} parent=0 // pred_check_branch
    %42 = sbr.rel (%p40) target = $region45
  $region44: #{mha_forward.3} parent=0 // pred_region
    %vm43 = vcmask 261120
    %44 = vst.msk [vmem:[#allocation2] sm:$0xff] %vm43, 0.0
    %45 = vst.msk [vmem:[#allocation2 + $0x8] sm:$0xff] %vm43, 0.0
    %46 = vst.msk [vmem:[#allocation3] sm:$0xff] %vm43, 0.0
    %47 = vst.msk [vmem:[#allocation3 + $0x8] sm:$0xff] %vm43, 0.0
    %48 = vst.msk [vmem:[#allocation4] sm:$0xff] %vm43, 0.0
    %49 = vst.msk [vmem:[#allocation4 + $0x8] sm:$0xff] %vm43, 0.0
  $region45: #{mha_forward.3} parent=0 // pred_fallthru
    _
  %v50 = vld [vmem:[%s0] sm:$0xf]
  %v51 = vld [vmem:[%s0 + $0x4] sm:$0xf]
  %v52 = vld [vmem:[#allocation2] sm:$0xff]
  %v53 = vld [vmem:[#allocation2 + $0x8] sm:$0xff]
  %v54 = vld [vmem:[%s1] sm:$0xf]
  %v55 = vld [vmem:[%s1 + $0x4] sm:$0xf]
  %v56 = vld [vmem:[%s1 + $0x8] sm:$0xf]
  %v57 = vld [vmem:[%s1 + $0xc] sm:$0xf]
  %v60 = vunpack.c.l.b16 %v50
  %v61 = vunpack.c.l.b16 %v51
  %v62 = vpack.c.b16 %v61, %v60
  %v67 = vunpack.c.l.b16 %v54
  %v68 = vunpack.c.l.b16 %v55
  %v69 = vunpack.c.l.b16 %v56
  %v70 = vunpack.c.l.b16 %v57
  %v71 = vpack.c.b16 %v68, %v67
  %v72 = vpack.c.b16 %v70, %v69
  %vm75 = vcmask 261120
  %v77 = vsel %vm75, %v62, 0
  %79 = vmatprep.subr.bf16.mxu0 0
  %80 = vmatpush1.bf16.msra.mxu0 %v71
  %81 = vmatprep.subr.bf16.mxu0 0
  %82 = vmatpush1.bf16.msra.mxu0 %v72
  %83 = vmatprep.subr.bf16.mxu0 0
  %84 = vmatpush1.bf16.msra.mxu0 0
  %85 = vmatprep.subr.bf16.mxu0 0
  %86 = vmatpush1.bf16.msra.mxu0 0
  %87 = vmatprep.subr.bf16.mxu0 0
  %88 = vmatpush1.bf16.msra.mxu0 0
  %89 = vmatprep.subr.bf16.mxu0 0
  %90 = vmatpush1.bf16.msra.mxu0 0
  %91 = vmatprep.subr.bf16.mxu0 0
  %92 = vmatpush1.bf16.msra.mxu0 0
  %93 = vmatprep.subr.bf16.mxu0 0
  %94 = vmatpush1.bf16.msra.mxu0 0
  %95 = vmatprep.subr.bf16.mxu0 0
  %96 = vmatpush1.bf16.msra.mxu0 0
  %97 = vmatprep.subr.bf16.mxu0 0
  %98 = vmatpush1.bf16.msra.mxu0 0
  %99 = vmatprep.subr.bf16.mxu0 0
  %100 = vmatpush1.bf16.msra.mxu0 0
  %101 = vmatprep.subr.bf16.mxu0 0
  %102 = vmatpush1.bf16.msra.mxu0 0
  %103 = vmatprep.subr.bf16.mxu0 0
  %104 = vmatpush1.bf16.msra.mxu0 0
  %105 = vmatprep.subr.bf16.mxu0 0
  %106 = vmatpush1.bf16.msra.mxu0 0
  %107 = vmatprep.subr.bf16.mxu0 0
  %108 = vmatpush1.bf16.msra.mxu0 0
  %109 = vmatprep.subr.bf16.mxu0 0
  %110 = vmatpush1.bf16.msra.mxu0 0
  %111 = vmatprep.mubr.bf16.mxu0 0
  %112 = vmatmul.mubr.bf16.gmra.mrb[0].mxu0 %v77
  %v113 = vpop.f32.mrb[0].mxu0
  %v114 = vadd.f32 0.0, %v113
  %v115 = vpop.f32.mrb[0].mxu0
  %v116 = vpop.f32.mrb[0].mxu0
  %v117 = vadd.f32 0.0, %v116
  %v118 = vpop.f32.mrb[0].mxu0
  %119 = vdwg.mxu0
  %v120 = vadd.f32 %v52, %v114
  %v121 = vadd.f32 %v53, %v117
  %122 = vst.msk [vmem:[#allocation2] sm:$0xff] %vm75, %v120
  %123 = vst.msk [vmem:[#allocation2 + $0x8] sm:$0xff] %vm75, %v121
  %v124 = vld [vmem:[#allocation3] sm:$0xff]
  %v125 = vld [vmem:[#allocation3 + $0x8] sm:$0xff]
  %v126 = vld [vmem:[%s2] sm:$0xf]
  %v127 = vld [vmem:[%s2 + $0x4] sm:$0xf]
  %v128 = vld [vmem:[%s2 + $0x8] sm:$0xf]
  %v129 = vld [vmem:[%s2 + $0xc] sm:$0xf]
  %v134 = vunpack.c.l.b16 %v126
  %v135 = vunpack.c.l.b16 %v127
  %v136 = vunpack.c.l.b16 %v128
  %v137 = vunpack.c.l.b16 %v129
  %v138 = vpack.c.b16 %v135, %v134
  %v139 = vpack.c.b16 %v137, %v136
  %142 = vmatprep.subr.bf16.mxu0 0
  %143 = vmatpush1.bf16.msra.mxu0 %v138
  %144 = vmatprep.subr.bf16.mxu0 0
  %145 = vmatpush1.bf16.msra.mxu0 %v139
  %146 = vmatprep.subr.bf16.mxu0 0
  %147 = vmatpush1.bf16.msra.mxu0 0
  %148 = vmatprep.subr.bf16.mxu0 0
  %149 = vmatpush1.bf16.msra.mxu0 0
  %150 = vmatprep.subr.bf16.mxu0 0
  %151 = vmatpush1.bf16.msra.mxu0 0
  %152 = vmatprep.subr.bf16.mxu0 0
  %153 = vmatpush1.bf16.msra.mxu0 0
  %154 = vmatprep.subr.bf16.mxu0 0
  %155 = vmatpush1.bf16.msra.mxu0 0
  %156 = vmatprep.subr.bf16.mxu0 0
  %157 = vmatpush1.bf16.msra.mxu0 0
  %158 = vmatprep.subr.bf16.mxu0 0
  %159 = vmatpush1.bf16.msra.mxu0 0
  %160 = vmatprep.subr.bf16.mxu0 0
  %161 = vmatpush1.bf16.msra.mxu0 0
  %162 = vmatprep.subr.bf16.mxu0 0
  %163 = vmatpush1.bf16.msra.mxu0 0
  %164 = vmatprep.subr.bf16.mxu0 0
  %165 = vmatpush1.bf16.msra.mxu0 0
  %166 = vmatprep.subr.bf16.mxu0 0
  %167 = vmatpush1.bf16.msra.mxu0 0
  %168 = vmatprep.subr.bf16.mxu0 0
  %169 = vmatpush1.bf16.msra.mxu0 0
  %170 = vmatprep.subr.bf16.mxu0 0
  %171 = vmatpush1.bf16.msra.mxu0 0
  %172 = vmatprep.subr.bf16.mxu0 0
  %173 = vmatpush1.bf16.msra.mxu0 0
  %174 = vmatprep.mubr.bf16.mxu0 0
  %175 = vmatmul.mubr.bf16.gmra.mrb[0].mxu0 %v77
  %v176 = vpop.f32.mrb[0].mxu0
  %v177 = vadd.f32 0.0, %v176
  %v178 = vpop.f32.mrb[0].mxu0
  %v179 = vpop.f32.mrb[0].mxu0
  %v180 = vadd.f32 0.0, %v179
  %v181 = vpop.f32.mrb[0].mxu0
  %182 = vdwg.mxu0
  %v183 = vadd.f32 %v124, %v177
  %v184 = vadd.f32 %v125, %v180
  %185 = vst.msk [vmem:[#allocation3] sm:$0xff] %vm75, %v183
  %186 = vst.msk [vmem:[#allocation3 + $0x8] sm:$0xff] %vm75, %v184
  %v187 = vld [vmem:[#allocation4] sm:$0xff]
  %v188 = vld [vmem:[#allocation4 + $0x8] sm:$0xff]
  %v189 = vld [vmem:[%s3] sm:$0xf]
  %v190 = vld [vmem:[%s3 + $0x4] sm:$0xf]
  %v191 = vld [vmem:[%s3 + $0x8] sm:$0xf]
  %v192 = vld [vmem:[%s3 + $0xc] sm:$0xf]
  %v197 = vunpack.c.l.b16 %v189
  %v198 = vunpack.c.l.b16 %v190
  %v199 = vunpack.c.l.b16 %v191
  %v200 = vunpack.c.l.b16 %v192
  %v201 = vpack.c.b16 %v198, %v197
  %v202 = vpack.c.b16 %v200, %v199
  %205 = vmatprep.subr.bf16.mxu0 0
  %206 = vmatpush1.bf16.msra.mxu0 %v201
  %207 = vmatprep.subr.bf16.mxu0 0
  %208 = vmatpush1.bf16.msra.mxu0 %v202
  %209 = vmatprep.subr.bf16.mxu0 0
  %210 = vmatpush1.bf16.msra.mxu0 0
  %211 = vmatprep.subr.bf16.mxu0 0
  %212 = vmatpush1.bf16.msra.mxu0 0
  %213 = vmatprep.subr.bf16.mxu0 0
  %214 = vmatpush1.bf16.msra.mxu0 0
  %215 = vmatprep.subr.bf16.mxu0 0
  %216 = vmatpush1.bf16.msra.mxu0 0
  %217 = vmatprep.subr.bf16.mxu0 0
  %218 = vmatpush1.bf16.msra.mxu0 0
  %219 = vmatprep.subr.bf16.mxu0 0
  %220 = vmatpush1.bf16.msra.mxu0 0
  %221 = vmatprep.subr.bf16.mxu0 0
  %222 = vmatpush1.bf16.msra.mxu0 0
  %223 = vmatprep.subr.bf16.mxu0 0
  %224 = vmatpush1.bf16.msra.mxu0 0
  %225 = vmatprep.subr.bf16.mxu0 0
  %226 = vmatpush1.bf16.msra.mxu0 0
  %227 = vmatprep.subr.bf16.mxu0 0
  %228 = vmatpush1.bf16.msra.mxu0 0
  %229 = vmatprep.subr.bf16.mxu0 0
  %230 = vmatpush1.bf16.msra.mxu0 0
  %231 = vmatprep.subr.bf16.mxu0 0
  %232 = vmatpush1.bf16.msra.mxu0 0
  %233 = vmatprep.subr.bf16.mxu0 0
  %234 = vmatpush1.bf16.msra.mxu0 0
  %235 = vmatprep.subr.bf16.mxu0 0
  %236 = vmatpush1.bf16.msra.mxu0 0
  %237 = vmatprep.mubr.bf16.mxu0 0
  %238 = vmatmul.mubr.bf16.gmra.mrb[0].mxu0 %v77
  %v239 = vpop.f32.mrb[0].mxu0
  %v240 = vadd.f32 0.0, %v239
  %v241 = vpop.f32.mrb[0].mxu0
  %v242 = vpop.f32.mrb[0].mxu0
  %v243 = vadd.f32 0.0, %v242
  %v244 = vpop.f32.mrb[0].mxu0
  %245 = vdwg.mxu0
  %v246 = vadd.f32 %v187, %v240
  %v247 = vadd.f32 %v188, %v243
  %248 = vst.msk [vmem:[#allocation4] sm:$0xff] %vm75, %v246
  %249 = vst.msk [vmem:[#allocation4 + $0x8] sm:$0xff] %vm75, %v247
  // Predicated region
  $region46: #{mha_forward.3} parent=0 // pred_check
    %p250 = pneg %p39
  $region47: #{mha_forward.3} parent=0 // pred_check_branch
    %252 = sbr.rel (%p250) target = $region49
  $region48: #{mha_forward.3} parent=0 // pred_region
    %v253 = vld [vmem:[%s7] sm:$0xff]
    %v254 = vld [vmem:[%s7 + $0x8] sm:$0xff]
    %v255 = vld [vmem:[%s8] sm:$0xff]
    %v256 = vld [vmem:[%s8 + $0x8] sm:$0xff]
    %v257 = vld [vmem:[%s9] sm:$0xf]
    %v258 = vld [vmem:[%s9 + $0x4] sm:$0xf]
    %v259 = vld [vmem:[%s9 + $0x8] sm:$0xf]
    %v260 = vld [vmem:[%s9 + $0xc] sm:$0xf]
    %v261 = vld [vmem:[#allocation2] sm:$0xff]
    %v262 = vld [vmem:[#allocation2 + $0x8] sm:$0xff]
    %v263 = vld [vmem:[%s4] sm:$0x1]
    %v265 = vlaneseq
    %v266 = vshrl.u32 %v265, 7
    %v267 = vsub.s32 0, %v266
    %v268 = vrot.slane %v263, %v267
    %v270 = vadd.f32 %v261, %v268
    %v271 = vadd.f32 %v262, %v268
    %v272 = vld [vmem:[#allocation3] sm:$0xff]
    %v273 = vld [vmem:[#allocation3 + $0x8] sm:$0xff]
    %v274 = vld [vmem:[%s5] sm:$0x1]
    %v276 = vlaneseq
    %v277 = vshrl.u32 %v276, 7
    %v278 = vsub.s32 0, %v277
    %v279 = vrot.slane %v274, %v278
    %v281 = vadd.f32 %v272, %v279
    %v282 = vadd.f32 %v273, %v279
    %v283 = vpack.c.bf16 %v271, %v270
    %v288 = vunpack.c.l.b16 %v257
    %v289 = vunpack.c.l.b16 %v258
    %v290 = vunpack.c.l.b16 %v259
    %v291 = vunpack.c.l.b16 %v260
    %v292 = vpack.c.b16 %v289, %v288
    %v293 = vpack.c.b16 %v291, %v290
    %v297 = vsel %vm75, %v283, 0
    %299 = vmatprep.subr.bf16.mxu0 0
    %300 = vmatpush1.bf16.msra.mxu0 %v292
    %301 = vmatprep.subr.bf16.mxu0 0
    %302 = vmatpush1.bf16.msra.mxu0 %v293
    %303 = vmatprep.subr.bf16.mxu0 0
    %304 = vmatpush1.bf16.msra.mxu0 0
    %305 = vmatprep.subr.bf16.mxu0 0
    %306 = vmatpush1.bf16.msra.mxu0 0
    %307 = vmatprep.subr.bf16.mxu0 0
    %308 = vmatpush1.bf16.msra.mxu0 0
    %309 = vmatprep.subr.bf16.mxu0 0
    %310 = vmatpush1.bf16.msra.mxu0 0
    %311 = vmatprep.subr.bf16.mxu0 0
    %312 = vmatpush1.bf16.msra.mxu0 0
    %313 = vmatprep.subr.bf16.mxu0 0
    %314 = vmatpush1.bf16.msra.mxu0 0
    %315 = vmatprep.subr.bf16.mxu0 0
    %316 = vmatpush1.bf16.msra.mxu0 0
    %317 = vmatprep.subr.bf16.mxu0 0
    %318 = vmatpush1.bf16.msra.mxu0 0
    %319 = vmatprep.subr.bf16.mxu0 0
    %320 = vmatpush1.bf16.msra.mxu0 0
    %321 = vmatprep.subr.bf16.mxu0 0
    %322 = vmatpush1.bf16.msra.mxu0 0
    %323 = vmatprep.subr.bf16.mxu0 0
    %324 = vmatpush1.bf16.msra.mxu0 0
    %325 = vmatprep.subr.bf16.mxu0 0
    %326 = vmatpush1.bf16.msra.mxu0 0
    %327 = vmatprep.subr.bf16.mxu0 0
    %328 = vmatpush1.bf16.msra.mxu0 0
    %329 = vmatprep.subr.bf16.mxu0 0
    %330 = vmatpush1.bf16.msra.mxu0 0
    %331 = vmatprep.mubr.bf16.mxu0 0
    %332 = vmatmul.mubr.bf16.gmra.mrb[0].mxu0 %v297
    %v333 = vpop.f32.mrb[0].mxu0
    %v334 = vadd.f32 0.0, %v333
    %v335 = vpop.f32.mrb[0].mxu0
    %v336 = vpop.f32.mrb[0].mxu0
    %v337 = vadd.f32 0.0, %v336
    %v338 = vpop.f32.mrb[0].mxu0
    %339 = vdwg.mxu0
    %v340 = vpack.c.bf16 %v282, %v281
    %v342 = vsel %vm75, %v340, 0
    %344 = vmatprep.subr.bf16.mxu0 0
    %345 = vmatpush1.bf16.msra.mxu0 %v292
    %346 = vmatprep.subr.bf16.mxu0 0
    %347 = vmatpush1.bf16.msra.mxu0 %v293
    %348 = vmatprep.subr.bf16.mxu0 0
    %349 = vmatpush1.bf16.msra.mxu0 0
    %350 = vmatprep.subr.bf16.mxu0 0
    %351 = vmatpush1.bf16.msra.mxu0 0
    %352 = vmatprep.subr.bf16.mxu0 0
    %353 = vmatpush1.bf16.msra.mxu0 0
    %354 = vmatprep.subr.bf16.mxu0 0
    %355 = vmatpush1.bf16.msra.mxu0 0
    %356 = vmatprep.subr.bf16.mxu0 0
    %357 = vmatpush1.bf16.msra.mxu0 0
    %358 = vmatprep.subr.bf16.mxu0 0
    %359 = vmatpush1.bf16.msra.mxu0 0
    %360 = vmatprep.subr.bf16.mxu0 0
    %361 = vmatpush1.bf16.msra.mxu0 0
    %362 = vmatprep.subr.bf16.mxu0 0
    %363 = vmatpush1.bf16.msra.mxu0 0
    %364 = vmatprep.subr.bf16.mxu0 0
    %365 = vmatpush1.bf16.msra.mxu0 0
    %366 = vmatprep.subr.bf16.mxu0 0
    %367 = vmatpush1.bf16.msra.mxu0 0
    %368 = vmatprep.subr.bf16.mxu0 0
    %369 = vmatpush1.bf16.msra.mxu0 0
    %370 = vmatprep.subr.bf16.mxu0 0
    %371 = vmatpush1.bf16.msra.mxu0 0
    %372 = vmatprep.subr.bf16.mxu0 0
    %373 = vmatpush1.bf16.msra.mxu0 0
    %374 = vmatprep.subr.bf16.mxu0 0
    %375 = vmatpush1.bf16.msra.mxu0 0
    %376 = vmatprep.mubr.bf16.mxu0 0
    %377 = vmatmul.mubr.bf16.gmra.mrb[0].mxu0 %v342
    %v378 = vpop.f32.mrb[0].mxu0
    %v379 = vadd.f32 0.0, %v378
    %v380 = vpop.f32.mrb[0].mxu0
    %v381 = vpop.f32.mrb[0].mxu0
    %v382 = vadd.f32 0.0, %v381
    %v383 = vpop.f32.mrb[0].mxu0
    %384 = vdwg.mxu0
    %v385 = vmul.f32 %v270, %v253
    %v386 = vmul.f32 %v271, %v254
    %v387 = vmul.f32 %v334, %v255
    %v388 = vmul.f32 %v337, %v256
    %v389 = vadd.f32 %v385, %v387
    %v390 = vadd.f32 %v386, %v388
    %v391 = vpack.c.bf16 %v390, %v389
    %v393 = vunpack.c.l.b16 %v391
    %v394 = vunpack.c.h.b16 %v391
    %v395 = vpack.c.b16 %v393, %v393
    %v396 = vpack.c.b16 %v394, %v394
    %vm399 = vcmask 257024
    %400 = vst.msk [vmem:[%s10] sm:$0xf] %vm399, %v395
    %401 = vst.msk [vmem:[%s10 + $0x4] sm:$0xf] %vm399, %v396
    %v402 = vmul.f32 %v281, %v253
    %v403 = vmul.f32 %v282, %v254
    %v404 = vmul.f32 %v379, %v255
    %v405 = vmul.f32 %v382, %v256
    %v406 = vadd.f32 %v402, %v404
    %v407 = vadd.f32 %v403, %v405
    %v408 = vpack.c.bf16 %v407, %v406
    %v410 = vunpack.c.l.b16 %v408
    %v411 = vunpack.c.h.b16 %v408
    %v412 = vpack.c.b16 %v410, %v410
    %v413 = vpack.c.b16 %v411, %v411
    %416 = vst.msk [vmem:[%s11] sm:$0xf] %vm399, %v412
    %417 = vst.msk [vmem:[%s11 + $0x4] sm:$0xf] %vm399, %v413
    %v418 = vld [vmem:[#allocation4] sm:$0xff]
    %v419 = vld [vmem:[#allocation4 + $0x8] sm:$0xff]
    %v420 = vld [vmem:[%s6] sm:$0x1]
    %v422 = vlaneseq
    %v423 = vshrl.u32 %v422, 7
    %v424 = vsub.s32 0, %v423
    %v425 = vrot.slane %v420, %v424
    %v427 = vadd.f32 %v418, %v425
    %v428 = vadd.f32 %v419, %v425
    %v429 = vpack.c.bf16 %v428, %v427
    %v431 = vunpack.c.l.b16 %v429
    %v432 = vunpack.c.h.b16 %v429
    %v433 = vpack.c.b16 %v431, %v431
    %v434 = vpack.c.b16 %v432, %v432
    %437 = vst.msk [vmem:[%s12] sm:$0xf] %vm399, %v433
    %438 = vst.msk [vmem:[%s12 + $0x4] sm:$0xf] %vm399, %v434
  $region49: #{mha_forward.3} parent=0 // pred_fallthru
    _
  // Predicated region
  $region50: #{mha_forward.3} parent=0 // pred_check
    _
  $region51: #{mha_forward.3} parent=0 // pred_check_branch
    %440 = sbr.rel (0) target = $region53
  $region52: #{mha_forward.3} parent=0 // pred_region
    _
  $region53: #{mha_forward.3} parent=0 // pred_fallthru
    _
  // Predicated region
  $region54: #{mha_forward.3} parent=0 // pred_check
    _
  $region55: #{mha_forward.3} parent=0 // pred_check_branch
    %442 = sbr.rel (0) target = $region57
  $region56: #{mha_forward.3} parent=0 // pred_region
    _
  $region57: #{mha_forward.3} parent=0 // pred_fallthru
    _
  // Predicated region
  $region58: #{mha_forward.3} parent=0 // pred_check
    _
  $region59: #{mha_forward.3} parent=0 // pred_check_branch
    %444 = sbr.rel (0) target = $region61
  $region60: #{mha_forward.3} parent=0 // pred_region
    _
  $region61: #{mha_forward.3} parent=0 // pred_fallthru
    _
  // Predicated region
  $region62: #{mha_forward.3} parent=0 // pred_check
    _
  $region63: #{mha_forward.3} parent=0 // pred_check_branch
    %446 = sbr.rel (0) target = $region65
  $region64: #{mha_forward.3} parent=0 // pred_region
    _
  $region65: #{mha_forward.3} parent=0 // pred_fallthru
    _
  // Predicated region
  $region66: #{mha_forward.3} parent=0 // pred_check
    _
  $region67: #{mha_forward.3} parent=0 // pred_check_branch
    %448 = sbr.rel (0) target = $region69
  $region68: #{mha_forward.3} parent=0 // pred_region
    _
  $region69: #{mha_forward.3} parent=0 // pred_fallthru
    _
  // Predicated region
  $region70: #{mha_forward.3} parent=0 // pred_check
    _
  $region71: #{mha_forward.3} parent=0 // pred_check_branch
    %450 = sbr.rel (0) target = $region73
  $region72: #{mha_forward.3} parent=0 // pred_region
    _
  $region73: #{mha_forward.3} parent=0 // pred_fallthru
    _

// kernel: mha_forward.4
$region0: #{mha_forward.4}
  #allocation0 [shape = 'u32[]', space=smem, size = 0x4, offset = 0x4, fixed_abs, tag = 'smem constant byte address 0x4 - core index']
  #allocation1 [shape = 'u32[144,128]{1,0:T(1,128)}', space=vmem, size = 0x12000, scoped, tag = 'internal scratch']
  #allocation2 [shape = 'f32[8,4]{1,0:T(8,128)}', space=vmem, size = 0x1000, scoped, tag = 'scratch operand']
  #allocation3 [shape = 'f32[8,4]{1,0:T(8,128)}', space=vmem, size = 0x1000, scoped, tag = 'scratch operand']
  #allocation4 [shape = 'f32[8,32]{1,0:T(8,128)}', space=vmem, size = 0x1000, scoped, tag = 'scratch operand']
  %s0 = inlined_call_operand.vmem [shape: bf16[2,8,32], index: 0, kind: input, shape index: {}]
  %s1 = inlined_call_operand.vmem [shape: bf16[2,8,32], index: 1, kind: input, shape index: {}]
  %s2 = inlined_call_operand.vmem [shape: bf16[2,8,32], index: 2, kind: input, shape index: {}]
  %s3 = inlined_call_operand.vmem [shape: bf16[2,8,32], index: 3, kind: output, shape index: {}]
  %s4 = sld [smem:[#allocation0]]
  $region57: #{mha_forward.4} parent=0
    _
  %s6 = ssub.s32 1, %s4
  %s7 = scalar_select 0, %s6, %s4
  loop: start=0, step=1, limit=4
  $region2: #{mha_forward.4} parent=0 // loop_pre_header
    _
  $region3: #{mha_forward.4} parent=0 // loop_header
    %s9 = sphi 0, %s13
    %p10 = scmp.ge.s32.totalorder %s9, 4
    %s16 = sphi 0, %s35
    %s17 = sphi 0, %s31
    %s18 = sphi 0, %s27
    %s19 = sphi 0, %s16
    %s20 = sphi 0, %s17
    %s21 = sphi 0, %s18
    %s22 = sphi 0, %s19
    %s23 = sphi 0, %s20
    %s24 = sphi 0, %s21
    %s40 = sphi 0, %s42
    %s43 = sphi 0, %s40
    %s44 = sphi 0, %s43
    %s60 = sphi 0, %s44
    %s72 = sphi 0, %s74
    %s75 = sphi 0, %s72
    %s76 = sphi 0, %s75
    %s92 = sphi 0, %s76
    %s104 = sphi 0, %s106
    %s107 = sphi 0, %s104
    %s108 = sphi 0, %s107
    %s124 = sphi 0, %s108
    %s132 = sphi 0, %s134
    %s135 = sphi 0, %s132
    %s136 = sphi 0, %s135
    %s152 = sphi 0, %s136
  $region4: #{mha_forward.4} parent=0 // loop_header_branch
    %12 = sbr.rel (%p10) target = $region8
  $region5: #{mha_forward.4} parent=0 // loop_body
    %s14 = ssub.s32 %s9, 1
    %s15 = ssub.s32 %s9, 2
    %s25 = sadd.s32 1, %s18
    %p26 = scmp.ge.s32.totalorder %s25, 1
    %s27 = scalar_select %p26, 0, %s25
    %s28 = sadd.s32 1, %s17
    %s29 = scalar_select %p26, %s28, %s17
    %p30 = scmp.ge.s32.totalorder %s29, 1
    %s31 = scalar_select %p30, 0, %s29
    %s32 = sadd.s32 1, %s16
    %s33 = scalar_select %p30, %s32, %s16
    %p34 = scmp.ge.s32.totalorder %s33, 2
    %s35 = scalar_select %p34, 0, %s33
    %s36 = ssub.s32 %s16, %s35
    %s37 = ssub.s32 %s17, %s31
    %s38 = sor.u32 %s36, %s37
    %p39 = scmp.eq.s32.totalorder %s38, 0
    %s41 = sadd.s32 %s40, 1
    %s42 = scalar_select %p39, %s40, %s41
    %p45 = pneg %p39
    %p46 = scmp.eq.s32.totalorder %s9, 1
    %p47 = por %p45, %p46
    %p48 = scmp.ne.s32.totalorder %s40, %s43
    %p49 = scmp.eq.s32.totalorder %s9, 0
    %p50 = por %p48, %p49
    %p51 = scmp.ne.s32.totalorder %s40, %s43
    %p52 = scmp.eq.s32.totalorder %s14, 1
    %p53 = por %p51, %p52
    %p54 = scmp.ne.s32.totalorder %s43, %s44
    %p55 = scmp.eq.s32.totalorder %s14, 0
    %p56 = por %p54, %p55
    %p57 = scmp.ne.s32.totalorder %s43, %s44
    %p58 = scmp.eq.s32.totalorder %s15, 1
    %p59 = por %p57, %p58
    %p61 = scmp.ne.s32.totalorder %s44, %s60
    %p62 = scmp.eq.s32.totalorder %s15, 0
    %p63 = por %p61, %p62
    %p64 = scmp.lt.s32.totalorder %s18, %s17
    %s65 = scalar_select %p64, %s18, %s17
    %p66 = scmp.lt.s32.totalorder %s27, %s31
    %s67 = scalar_select %p66, %s27, %s31
    %s68 = ssub.s32 %s16, %s35
    %s69 = ssub.s32 %s65, %s67
    %s70 = sor.u32 %s68, %s69
    %p71 = scmp.eq.s32.totalorder %s70, 0
    %s73 = sadd.s32 %s72, 1
    %s74 = scalar_select %p71, %s72, %s73
    %p77 = pneg %p71
    %p78 = scmp.eq.s32.totalorder %s9, 1
    %p79 = por %p77, %p78
    %p80 = scmp.ne.s32.totalorder %s72, %s75
    %p81 = scmp.eq.s32.totalorder %s9, 0
    %p82 = por %p80, %p81
    %p83 = scmp.ne.s32.totalorder %s72, %s75
    %p84 = scmp.eq.s32.totalorder %s14, 1
    %p85 = por %p83, %p84
    %p86 = scmp.ne.s32.totalorder %s75, %s76
    %p87 = scmp.eq.s32.totalorder %s14, 0
    %p88 = por %p86, %p87
    %p89 = scmp.ne.s32.totalorder %s75, %s76
    %p90 = scmp.eq.s32.totalorder %s15, 1
    %p91 = por %p89, %p90
    %p93 = scmp.ne.s32.totalorder %s76, %s92
    %p94 = scmp.eq.s32.totalorder %s15, 0
    %p95 = por %p93, %p94
    %p96 = scmp.lt.s32.totalorder %s18, %s17
    %s97 = scalar_select %p96, %s18, %s17
    %p98 = scmp.lt.s32.totalorder %s27, %s31
    %s99 = scalar_select %p98, %s27, %s31
    %s100 = ssub.s32 %s16, %s35
    %s101 = ssub.s32 %s97, %s99
    %s102 = sor.u32 %s100, %s101
    %p103 = scmp.eq.s32.totalorder %s102, 0
    %s105 = sadd.s32 %s104, 1
    %s106 = scalar_select %p103, %s104, %s105
    %p109 = pneg %p103
    %p110 = scmp.eq.s32.totalorder %s9, 1
    %p111 = por %p109, %p110
    %p112 = scmp.ne.s32.totalorder %s104, %s107
    %p113 = scmp.eq.s32.totalorder %s9, 0
    %p114 = por %p112, %p113
    %p115 = scmp.ne.s32.totalorder %s104, %s107
    %p116 = scmp.eq.s32.totalorder %s14, 1
    %p117 = por %p115, %p116
    %p118 = scmp.ne.s32.totalorder %s107, %s108
    %p119 = scmp.eq.s32.totalorder %s14, 0
    %p120 = por %p118, %p119
    %p121 = scmp.ne.s32.totalorder %s107, %s108
    %p122 = scmp.eq.s32.totalorder %s15, 1
    %p123 = por %p121, %p122
    %p125 = scmp.ne.s32.totalorder %s108, %s124
    %p126 = scmp.eq.s32.totalorder %s15, 0
    %p127 = por %p125, %p126
    %s128 = ssub.s32 %s16, %s35
    %s129 = ssub.s32 %s17, %s31
    %s130 = sor.u32 %s128, %s129
    %p131 = scmp.eq.s32.totalorder %s130, 0
    %s133 = sadd.s32 %s132, 1
    %s134 = scalar_select %p131, %s132, %s133
    %p137 = pneg %p131
    %p138 = scmp.eq.s32.totalorder %s9, 1
    %p139 = por %p137, %p138
    %p140 = scmp.ne.s32.totalorder %s132, %s135
    %p141 = scmp.eq.s32.totalorder %s9, 0
    %p142 = por %p140, %p141
    %p143 = scmp.ne.s32.totalorder %s132, %s135
    %p144 = scmp.eq.s32.totalorder %s14, 1
    %p145 = por %p143, %p144
    %p146 = scmp.ne.s32.totalorder %s135, %s136
    %p147 = scmp.eq.s32.totalorder %s14, 0
    %p148 = por %p146, %p147
    %p149 = scmp.ne.s32.totalorder %s135, %s136
    %p150 = scmp.eq.s32.totalorder %s15, 1
    %p151 = por %p149, %p150
    %p153 = scmp.ne.s32.totalorder %s136, %s152
    %p154 = scmp.eq.s32.totalorder %s15, 0
    %p155 = por %p153, %p154
    %p156 = scmp.le.s32.totalorder 1, %s9
    %p157 = scmp.lt.s32.totalorder %s9, 3
    %p158 = pnand %p156, %p157
    %p159 = pneg %p158
    // Predicated region
    $region9: #{mha_forward.4} parent=5 // pred_check
      _
    $region10: #{mha_forward.4} parent=5 // pred_check_branch
      %161 = sbr.rel (%p158) target = $region12
    $region11: #{mha_forward.4} parent=5 // pred_region
      %s162 = ssub.s32 %s9, 1
    $region12: #{mha_forward.4} parent=5 // pred_fallthru
      _
    %p163 = scmp.lt.s32.totalorder %s9, 2
    // Predicated region
    $region13: #{mha_forward.4} parent=5 // pred_check
      %p164 = pneg %p163
    $region14: #{mha_forward.4} parent=5 // pred_check_branch
      %166 = sbr.rel (%p164) target = $region16
    $region15: #{mha_forward.4} parent=5 // pred_region
      // Predicated region
      $region17: #{mha_forward.4} parent=15 // pred_check
        %p167 = pneg %p50
      $region18: #{mha_forward.4} parent=15 // pred_check_branch
        %169 = sbr.rel (%p167) target = $region20
      $region19: #{mha_forward.4} parent=15 // pred_region
        %p170 = scmp.lt.s32.totalorder %s16, 1
        %s171 = scalar_select %p170, %s16, 1
        %p172 = scmp.lt.s32.totalorder %s17, 0
        %s173 = scalar_select %p172, %s17, 0
        %s174 = sadd.s32 %s173, %s171
        %s175 = smul.addr %s174, 4
        %s176 = scalar_lea.vmem %s0, %s175
      $region20: #{mha_forward.4} parent=15 // pred_fallthru
        _
      // Predicated region
      $region21: #{mha_forward.4} parent=15 // pred_check
        %p177 = pneg %p82
      $region22: #{mha_forward.4} parent=15 // pred_check_branch
        %179 = sbr.rel (%p177) target = $region24
      $region23: #{mha_forward.4} parent=15 // pred_region
        %p180 = scmp.lt.s32.totalorder %s18, %s17
        %s181 = scalar_select %p180, %s18, %s17
        %p182 = scmp.lt.s32.totalorder %s16, 1
        %s183 = scalar_select %p182, %s16, 1
        %p184 = scmp.lt.s32.totalorder %s181, 0
        %s185 = scalar_select %p184, %s181, 0
        %s186 = sadd.s32 %s185, %s183
        %s187 = smul.addr %s186, 4
        %s188 = scalar_lea.vmem %s1, %s187
        %p189 = scmp.lt.s32.totalorder %s18, %s17
        %s190 = scalar_select %p189, %s18, %s17
      $region24: #{mha_forward.4} parent=15 // pred_fallthru
        _
      // Predicated region
      $region25: #{mha_forward.4} parent=15 // pred_check
        %p191 = pneg %p114
      $region26: #{mha_forward.4} parent=15 // pred_check_branch
        %193 = sbr.rel (%p191) target = $region28
      $region27: #{mha_forward.4} parent=15 // pred_region
        %p194 = scmp.lt.s32.totalorder %s18, %s17
        %s195 = scalar_select %p194, %s18, %s17
        %p196 = scmp.lt.s32.totalorder %s16, 1
        %s197 = scalar_select %p196, %s16, 1
        %p198 = scmp.lt.s32.totalorder %s195, 0
        %s199 = scalar_select %p198, %s195, 0
        %s200 = sadd.s32 %s199, %s197
        %s201 = smul.addr %s200, 4
        %s202 = scalar_lea.vmem %s2, %s201
        %p203 = scmp.lt.s32.totalorder %s18, %s17
        %s204 = scalar_select %p203, %s18, %s17
      $region28: #{mha_forward.4} parent=15 // pred_fallthru
        _
    $region16: #{mha_forward.4} parent=5 // pred_fallthru
      _
    %p205 = scmp.le.s32.totalorder 1, %s9
    %p206 = scmp.lt.s32.totalorder %s9, 3
    %p207 = pnand %p205, %p206
    %p208 = pneg %p207
    // Predicated region
    $region29: #{mha_forward.4} parent=5 // pred_check
      _
    $region30: #{mha_forward.4} parent=5 // pred_check_branch
      %210 = sbr.rel (%p207) target = $region32
    $region31: #{mha_forward.4} parent=5 // pred_region
      %s211 = ssub.s32 %s9, 1
      %p212 = scmp.lt.s32.totalorder %s19, 1
      %s213 = scalar_select %p212, %s19, 1
      %p214 = scmp.lt.s32.totalorder %s20, 0
      %s215 = scalar_select %p214, %s20, 0
      %s216 = sadd.s32 %s215, %s213
      %s217 = smul.addr %s216, 4
      %s218 = scalar_lea.vmem %s0, %s217
      %p219 = pneg %p56
      %p220 = pneg %p53
      %p221 = scmp.lt.s32.totalorder %s21, %s20
      %s222 = scalar_select %p221, %s21, %s20
      %p223 = scmp.lt.s32.totalorder %s19, 1
      %s224 = scalar_select %p223, %s19, 1
      %p225 = scmp.lt.s32.totalorder %s222, 0
      %s226 = scalar_select %p225, %s222, 0
      %s227 = sadd.s32 %s226, %s224
      %s228 = smul.addr %s227, 4
      %s229 = scalar_lea.vmem %s1, %s228
      %p230 = pneg %p88
      %p231 = pneg %p85
      %p232 = scmp.lt.s32.totalorder %s21, %s20
      %s233 = scalar_select %p232, %s21, %s20
      %p234 = scmp.lt.s32.totalorder %s19, 1
      %s235 = scalar_select %p234, %s19, 1
      %p236 = scmp.lt.s32.totalorder %s233, 0
      %s237 = scalar_select %p236, %s233, 0
      %s238 = sadd.s32 %s237, %s235
      %s239 = smul.addr %s238, 4
      %s240 = scalar_lea.vmem %s2, %s239
      %p241 = pneg %p120
      %p242 = pneg %p117
      %p243 = pneg %p148
      %p244 = pneg %p145
      %p245 = scmp.lt.s32.totalorder %s19, 1
      %s246 = scalar_select %p245, %s19, 1
      %p247 = scmp.lt.s32.totalorder %s20, 0
      %s248 = scalar_select %p247, %s20, 0
      %s249 = sadd.s32 %s248, %s246
      %s250 = smul.addr %s249, 4
      %s251 = scalar_lea.vmem %s3, %s250
      %p252 = scmp.lt.s32.totalorder %s19, 1
      %s253 = scalar_select %p252, %s19, 1
      %p254 = scmp.lt.s32.totalorder %s20, 0
      %s255 = scalar_select %p254, %s20, 0
      %s256 = sadd.s32 %s255, %s253
      %s257 = smul.addr %s256, 4
      %s258 = scalar_lea.vmem %s0, %s257
      %p259 = scmp.lt.s32.totalorder %s21, %s20
      %s260 = scalar_select %p259, %s21, %s20
      %p261 = scmp.lt.s32.totalorder %s19, 1
      %s262 = scalar_select %p261, %s19, 1
      %p263 = scmp.lt.s32.totalorder %s260, 0
      %s264 = scalar_select %p263, %s260, 0
      %s265 = sadd.s32 %s264, %s262
      %s266 = smul.addr %s265, 4
      %s267 = scalar_lea.vmem %s1, %s266
      %p268 = scmp.lt.s32.totalorder %s21, %s20
      %s269 = scalar_select %p268, %s21, %s20
      %p270 = scmp.lt.s32.totalorder %s21, %s20
      %s271 = scalar_select %p270, %s21, %s20
      %p272 = scmp.lt.s32.totalorder %s19, 1
      %s273 = scalar_select %p272, %s19, 1
      %p274 = scmp.lt.s32.totalorder %s271, 0
      %s275 = scalar_select %p274, %s271, 0
      %s276 = sadd.s32 %s275, %s273
      %s277 = smul.addr %s276, 4
      %s278 = scalar_lea.vmem %s2, %s277
      %p279 = scmp.lt.s32.totalorder %s21, %s20
      %s280 = scalar_select %p279, %s21, %s20
      %p281 = scmp.lt.s32.totalorder %s19, 1
      %s282 = scalar_select %p281, %s19, 1
      %p283 = scmp.lt.s32.totalorder %s20, 0
      %s284 = scalar_select %p283, %s20, 0
      %s285 = sadd.s32 %s284, %s282
      %s286 = smul.addr %s285, 4
      %s287 = scalar_lea.vmem %s3, %s286
      %p289 = scmp.eq.s32.totalorder %s21, 0
      // Predicated region
      $region33: #{mha_forward.4} parent=31 // pred_check
        %p290 = pneg %p289
      $region34: #{mha_forward.4} parent=31 // pred_check_branch
        %292 = sbr.rel (%p290) target = $region36
      $region35: #{mha_forward.4} parent=31 // pred_region
        %vm293 = vcmask 31744
        %294 = vst.msk [vmem:[#allocation2] sm:$0xff] %vm293, -inf
        %295 = vst.msk [vmem:[#allocation3] sm:$0xff] %vm293, 0.0
        %vm296 = vcmask 261120
        %297 = vst.msk [vmem:[#allocation4] sm:$0xff] %vm296, 0.0
      $region36: #{mha_forward.4} parent=31 // pred_fallthru
        _
      %p298 = scmp.le.s32.totalorder %s21, %s20
      // Predicated region
      $region37: #{mha_forward.4} parent=31 // pred_check
        %p299 = pneg %p298
      $region38: #{mha_forward.4} parent=31 // pred_check_branch
        %301 = sbr.rel (%p299) target = $region40
      $region39: #{mha_forward.4} parent=31 // pred_region
        %v302 = vld [vmem:[%s258] sm:$0xf]
        %v303 = vld [vmem:[%s267] sm:$0xf]
        %v304 = vld [vmem:[%s278] sm:$0xf]
        %s305 = smul.u32 %s20, 8
        %v306 = vlaneseq
        %v307 = vshrl.u32 %v306, 7
        %v308 = vstv %s305
        %v309 = vadd.s32 %v308, %v307
        %s310 = smul.u32 %s21, 8
        %v311 = vlaneseq
        %v312 = vand.u32 %v311, 127
        %v313 = vstv %s310
        %v314 = vadd.s32 %v313, %v312
        %vm315 = vcmp.le.s32.totalorder %v314, %v309
        %vm316 = vcmask 64512
        %v318 = vsel %vm316, %v302, 0
        %v321 = vsel %vm316, %v303, 0
        %323 = vmatprep.subr.bf16.mxu0 0
        %324 = vmatpush1.bf16.xpose.msra.mxu0 %v321
        %325 = vmatprep.subr.bf16.mxu0 0
        %326 = vmatpush1.bf16.xpose.msra.mxu0 0
        %327 = vmatprep.subr.bf16.mxu0 0
        %328 = vmatpush1.bf16.xpose.msra.mxu0 0
        %329 = vmatprep.subr.bf16.mxu0 0
        %330 = vmatpush1.bf16.xpose.msra.mxu0 0
        %331 = vmatprep.subr.bf16.mxu0 0
        %332 = vmatpush1.bf16.xpose.msra.mxu0 0
        %333 = vmatprep.subr.bf16.mxu0 0
        %334 = vmatpush1.bf16.xpose.msra.mxu0 0
        %335 = vmatprep.subr.bf16.mxu0 0
        %336 = vmatpush1.bf16.xpose.msra.mxu0 0
        %337 = vmatprep.subr.bf16.mxu0 0
        %338 = vmatpush1.bf16.xpose.msra.mxu0 0
        %339 = vmatprep.subr.bf16.mxu0 0
        %340 = vmatpush1.bf16.xpose.msra.mxu0 0
        %341 = vmatprep.subr.bf16.mxu0 0
        %342 = vmatpush1.bf16.xpose.msra.mxu0 0
        %343 = vmatprep.subr.bf16.mxu0 0
        %344 = vmatpush1.bf16.xpose.msra.mxu0 0
        %345 = vmatprep.subr.bf16.mxu0 0
        %346 = vmatpush1.bf16.xpose.msra.mxu0 0
        %347 = vmatprep.subr.bf16.mxu0 0
        %348 = vmatpush1.bf16.xpose.msra.mxu0 0
        %349 = vmatprep.subr.bf16.mxu0 0
        %350 = vmatpush1.bf16.xpose.msra.mxu0 0
        %351 = vmatprep.subr.bf16.mxu0 0
        %352 = vmatpush1.bf16.xpose.msra.mxu0 0
        %353 = vmatprep.subr.bf16.mxu0 0
        %354 = vmatpush1.bf16.xpose.msra.mxu0 0
        %355 = vmatprep.mubr.bf16.mxu0 0
        %356 = vmatmul.mubr.bf16.gmra.mrb[0].mxu0 %v318
        %v357 = vpop.f32.mrb[0].mxu0
        %v358 = vadd.f32 0.0, %v357
        %v359 = vpop.f32.mrb[0].mxu0
        %v360 = vpop.f32.mrb[0].mxu0
        %v361 = vpop.f32.mrb[0].mxu0
        %362 = vdwg.mxu0
        %v363 = vmul.f32 %v358, 0.35355338
        %v364 = vsel %vm315, %v363, -inf
        %v365 = vld [vmem:[#allocation2] sm:$0xff]
        %v366 = vsel %vm316, %v364, -inf
        %367 = vmax.xlane.f32.xlu0 %v366
        %v368 = vpop.xlane.xlu0 %367
        %v369 = vmax.f32 %v365, %v368
        %v370 = vsub.f32 %v365, %v369
        %v371 = vmul.f32 %v370, 1.442695
        %v372 = vpow.pop %v371
        %374 = vset.pattern.permute.xlu0 0
        %375 = vperm.xlu0 %374, %v369
        %v376 = vpop.permute.xlu0 %375
        %v378 = vsub.f32 %v364, %v376
        %v379 = vmul.f32 %v378, 1.442695
        %v380 = vpow.pop %v379
        %v381 = vld [vmem:[#allocation3] sm:$0xff]
        %v382 = vmul.f32 %v372, %v381
        %v383 = vsel %vm316, %v380, 0.0
        %384 = vadd.xlane.f32.xlu0 %v383
        %v385 = vpop.xlane.xlu0 %384
        %v386 = vadd.f32 %v382, %v385
        %vm387 = vcmask 7168
        %388 = vst.msk [vmem:[#allocation3] sm:$0xff] %vm387, %v386
        %v389 = vld [vmem:[#allocation4] sm:$0xff]
        %391 = vset.pattern.permute.xlu0 0
        %392 = vperm.xlu0 %391, %v372
        %v393 = vpop.permute.xlu0 %392
        %v395 = vmul.f32 %v393, %v389
        %v396 = vpack.c.bf16 %v380, %v380
        %v398 = vsel %vm316, %v396, 0
        %vm400 = vcmask 1043456
        %v402 = vsel %vm400, %v304, 0
        %404 = vmatprep.subr.bf16.mxu0 0
        %405 = vmatpush1.bf16.msra.mxu0 %v402
        %406 = vmatprep.subr.bf16.mxu0 0
        %407 = vmatpush1.bf16.msra.mxu0 0
        %408 = vmatprep.subr.bf16.mxu0 0
        %409 = vmatpush1.bf16.msra.mxu0 0
        %410 = vmatprep.subr.bf16.mxu0 0
        %411 = vmatpush1.bf16.msra.mxu0 0
        %412 = vmatprep.subr.bf16.mxu0 0
        %413 = vmatpush1.bf16.msra.mxu0 0
        %414 = vmatprep.subr.bf16.mxu0 0
        %415 = vmatpush1.bf16.msra.mxu0 0
        %416 = vmatprep.subr.bf16.mxu0 0
        %417 = vmatpush1.bf16.msra.mxu0 0
        %418 = vmatprep.subr.bf16.mxu0 0
        %419 = vmatpush1.bf16.msra.mxu0 0
        %420 = vmatprep.subr.bf16.mxu0 0
        %421 = vmatpush1.bf16.msra.mxu0 0
        %422 = vmatprep.subr.bf16.mxu0 0
        %423 = vmatpush1.bf16.msra.mxu0 0
        %424 = vmatprep.subr.bf16.mxu0 0
        %425 = vmatpush1.bf16.msra.mxu0 0
        %426 = vmatprep.subr.bf16.mxu0 0
        %427 = vmatpush1.bf16.msra.mxu0 0
        %428 = vmatprep.subr.bf16.mxu0 0
        %429 = vmatpush1.bf16.msra.mxu0 0
        %430 = vmatprep.subr.bf16.mxu0 0
        %431 = vmatpush1.bf16.msra.mxu0 0
        %432 = vmatprep.subr.bf16.mxu0 0
        %433 = vmatpush1.bf16.msra.mxu0 0
        %434 = vmatprep.subr.bf16.mxu0 0
        %435 = vmatpush1.bf16.msra.mxu0 0
        %436 = vmatprep.mubr.bf16.mxu0 0
        %437 = vmatmul.mubr.bf16.gmra.mrb[0].mxu0 %v398
        %v438 = vpop.f32.mrb[0].mxu0
        %v439 = vadd.f32 0.0, %v438
        %v440 = vpop.f32.mrb[0].mxu0
        %v441 = vpop.f32.mrb[0].mxu0
        %v442 = vpop.f32.mrb[0].mxu0
        %443 = vdwg.mxu0
        %v444 = vadd.f32 %v395, %v439
        %445 = vst.msk [vmem:[#allocation4] sm:$0xff] %vm316, %v444
        %446 = vst.msk [vmem:[#allocation2] sm:$0xff] %vm387, %v369
        %v448 = vunpack.c.l.b16 %v302
        %v449 = vpack.c.b16 %v448, %v448
        %450 = vrot.lane.b32.xlu0 %v449, 120
        %v451 = vpop.permute.xlu0 %450
        %v453 = vunpack.c.l.b16 %v303
        %v454 = vpack.c.b16 %v453, %v453
        %455 = vrot.lane.b32.xlu0 %v454, 120
        %v456 = vpop.permute.xlu0 %455
        %v458 = vsel %vm316, %v451, 0
        %v461 = vsel %vm316, %v456, 0
        %463 = vmatprep.subr.bf16.mxu0 0
        %464 = vmatpush1.bf16.xpose.msra.mxu0 %v461
        %465 = vmatprep.subr.bf16.mxu0 0
        %466 = vmatpush1.bf16.xpose.msra.mxu0 0
        %467 = vmatprep.subr.bf16.mxu0 0
        %468 = vmatpush1.bf16.xpose.msra.mxu0 0
        %469 = vmatprep.subr.bf16.mxu0 0
        %470 = vmatpush1.bf16.xpose.msra.mxu0 0
        %471 = vmatprep.subr.bf16.mxu0 0
        %472 = vmatpush1.bf16.xpose.msra.mxu0 0
        %473 = vmatprep.subr.bf16.mxu0 0
        %474 = vmatpush1.bf16.xpose.msra.mxu0 0
        %475 = vmatprep.subr.bf16.mxu0 0
        %476 = vmatpush1.bf16.xpose.msra.mxu0 0
        %477 = vmatprep.subr.bf16.mxu0 0
        %478 = vmatpush1.bf16.xpose.msra.mxu0 0
        %479 = vmatprep.subr.bf16.mxu0 0
        %480 = vmatpush1.bf16.xpose.msra.mxu0 0
        %481 = vmatprep.subr.bf16.mxu0 0
        %482 = vmatpush1.bf16.xpose.msra.mxu0 0
        %483 = vmatprep.subr.bf16.mxu0 0
        %484 = vmatpush1.bf16.xpose.msra.mxu0 0
        %485 = vmatprep.subr.bf16.mxu0 0
        %486 = vmatpush1.bf16.xpose.msra.mxu0 0
        %487 = vmatprep.subr.bf16.mxu0 0
        %488 = vmatpush1.bf16.xpose.msra.mxu0 0
        %489 = vmatprep.subr.bf16.mxu0 0
        %490 = vmatpush1.bf16.xpose.msra.mxu0 0
        %491 = vmatprep.subr.bf16.mxu0 0
        %492 = vmatpush1.bf16.xpose.msra.mxu0 0
        %493 = vmatprep.subr.bf16.mxu0 0
        %494 = vmatpush1.bf16.xpose.msra.mxu0 0
        %495 = vmatprep.mubr.bf16.mxu0 0
        %496 = vmatmul.mubr.bf16.gmra.mrb[0].mxu0 %v458
        %v497 = vpop.f32.mrb[0].mxu0
        %v498 = vadd.f32 0.0, %v497
        %v499 = vpop.f32.mrb[0].mxu0
        %v500 = vpop.f32.mrb[0].mxu0
        %v501 = vpop.f32.mrb[0].mxu0
        %502 = vdwg.mxu0
        %v503 = vmul.f32 %v498, 0.35355338
        %v504 = vsel %vm315, %v503, -inf
        %v505 = vld [vmem:[#allocation2] sm:$0xff]
        %v506 = vsel %vm316, %v504, -inf
        %507 = vmax.xlane.f32.xlu0 %v506
        %v508 = vpop.xlane.xlu0 %507
        %v509 = vmax.f32 %v505, %v508
        %v510 = vsub.f32 %v505, %v509
        %v511 = vmul.f32 %v510, 1.442695
        %v512 = vpow.pop %v511
        %514 = vset.pattern.permute.xlu0 1
        %515 = vperm.xlu0 %514, %v509
        %v516 = vpop.permute.xlu0 %515
        %v518 = vsub.f32 %v504, %v516
        %v519 = vmul.f32 %v518, 1.442695
        %v520 = vpow.pop %v519
        %v521 = vld [vmem:[#allocation3] sm:$0xff]
        %v522 = vmul.f32 %v512, %v521
        %v523 = vsel %vm316, %v520, 0.0
        %524 = vadd.xlane.f32.xlu0 %v523
        %v525 = vpop.xlane.xlu0 %524
        %v526 = vadd.f32 %v522, %v525
        %vm527 = vcmask 15368
        %528 = vst.msk [vmem:[#allocation3] sm:$0xff] %vm527, %v526
        %v529 = vld [vmem:[#allocation4] sm:$0xff]
        %531 = vset.pattern.permute.xlu0 1
        %532 = vperm.xlu0 %531, %v512
        %v533 = vpop.permute.xlu0 %532
        %v535 = vmul.f32 %v533, %v529
        %v536 = vpack.c.bf16 %v520, %v520
        %v538 = vunpack.c.l.b16 %v304
        %v539 = vpack.c.b16 %v538, %v538
        %540 = vrot.lane.b32.xlu0 %v539, 120
        %v541 = vpop.permute.xlu0 %540
        %v543 = vsel %vm316, %v536, 0
        %v546 = vsel %vm400, %v541, 0
        %548 = vmatprep.subr.bf16.mxu0 0
        %549 = vmatpush1.bf16.msra.mxu0 %v546
        %550 = vmatprep.subr.bf16.mxu0 0
        %551 = vmatpush1.bf16.msra.mxu0 0
        %552 = vmatprep.subr.bf16.mxu0 0
        %553 = vmatpush1.bf16.msra.mxu0 0
        %554 = vmatprep.subr.bf16.mxu0 0
        %555 = vmatpush1.bf16.msra.mxu0 0
        %556 = vmatprep.subr.bf16.mxu0 0
        %557 = vmatpush1.bf16.msra.mxu0 0
        %558 = vmatprep.subr.bf16.mxu0 0
        %559 = vmatpush1.bf16.msra.mxu0 0
        %560 = vmatprep.subr.bf16.mxu0 0
        %561 = vmatpush1.bf16.msra.mxu0 0
        %562 = vmatprep.subr.bf16.mxu0 0
        %563 = vmatpush1.bf16.msra.mxu0 0
        %564 = vmatprep.subr.bf16.mxu0 0
        %565 = vmatpush1.bf16.msra.mxu0 0
        %566 = vmatprep.subr.bf16.mxu0 0
        %567 = vmatpush1.bf16.msra.mxu0 0
        %568 = vmatprep.subr.bf16.mxu0 0
        %569 = vmatpush1.bf16.msra.mxu0 0
        %570 = vmatprep.subr.bf16.mxu0 0
        %571 = vmatpush1.bf16.msra.mxu0 0
        %572 = vmatprep.subr.bf16.mxu0 0
        %573 = vmatpush1.bf16.msra.mxu0 0
        %574 = vmatprep.subr.bf16.mxu0 0
        %575 = vmatpush1.bf16.msra.mxu0 0
        %576 = vmatprep.subr.bf16.mxu0 0
        %577 = vmatpush1.bf16.msra.mxu0 0
        %578 = vmatprep.subr.bf16.mxu0 0
        %579 = vmatpush1.bf16.msra.mxu0 0
        %580 = vmatprep.mubr.bf16.mxu0 0
        %581 = vmatmul.mubr.bf16.gmra.mrb[0].mxu0 %v543
        %v582 = vpop.f32.mrb[0].mxu0
        %v583 = vadd.f32 0.0, %v582
        %v584 = vpop.f32.mrb[0].mxu0
        %v585 = vpop.f32.mrb[0].mxu0
        %v586 = vpop.f32.mrb[0].mxu0
        %587 = vdwg.mxu0
        %589 = vrot.lane.b32.xlu0 %v583, 8
        %v590 = vpop.permute.xlu0 %589
        %v592 = vadd.f32 %v535, %v590
        %vm593 = vcmask 130112
        %594 = vst.msk [vmem:[#allocation4] sm:$0xff] %vm593, %v592
        %595 = vst.msk [vmem:[#allocation2] sm:$0xff] %vm527, %v509
        %596 = vrot.lane.b32.xlu0 %v449, 112
        %v597 = vpop.permute.xlu0 %596
        %598 = vrot.lane.b32.xlu0 %v454, 112
        %v599 = vpop.permute.xlu0 %598
        %v601 = vsel %vm316, %v597, 0
        %v604 = vsel %vm316, %v599, 0
        %606 = vmatprep.subr.bf16.mxu0 0
        %607 = vmatpush1.bf16.xpose.msra.mxu0 %v604
        %608 = vmatprep.subr.bf16.mxu0 0
        %609 = vmatpush1.bf16.xpose.msra.mxu0 0
        %610 = vmatprep.subr.bf16.mxu0 0
        %611 = vmatpush1.bf16.xpose.msra.mxu0 0
        %612 = vmatprep.subr.bf16.mxu0 0
        %613 = vmatpush1.bf16.xpose.msra.mxu0 0
        %614 = vmatprep.subr.bf16.mxu0 0
        %615 = vmatpush1.bf16.xpose.msra.mxu0 0
        %616 = vmatprep.subr.bf16.mxu0 0
        %617 = vmatpush1.bf16.xpose.msra.mxu0 0
        %618 = vmatprep.subr.bf16.mxu0 0
        %619 = vmatpush1.bf16.xpose.msra.mxu0 0
        %620 = vmatprep.subr.bf16.mxu0 0
        %621 = vmatpush1.bf16.xpose.msra.mxu0 0
        %622 = vmatprep.subr.bf16.mxu0 0
        %623 = vmatpush1.bf16.xpose.msra.mxu0 0
        %624 = vmatprep.subr.bf16.mxu0 0
        %625 = vmatpush1.bf16.xpose.msra.mxu0 0
        %626 = vmatprep.subr.bf16.mxu0 0
        %627 = vmatpush1.bf16.xpose.msra.mxu0 0
        %628 = vmatprep.subr.bf16.mxu0 0
        %629 = vmatpush1.bf16.xpose.msra.mxu0 0
        %630 = vmatprep.subr.bf16.mxu0 0
        %631 = vmatpush1.bf16.xpose.msra.mxu0 0
        %632 = vmatprep.subr.bf16.mxu0 0
        %633 = vmatpush1.bf16.xpose.msra.mxu0 0
        %634 = vmatprep.subr.bf16.mxu0 0
        %635 = vmatpush1.bf16.xpose.msra.mxu0 0
        %636 = vmatprep.subr.bf16.mxu0 0
        %637 = vmatpush1.bf16.xpose.msra.mxu0 0
        %638 = vmatprep.mubr.bf16.mxu0 0
        %639 = vmatmul.mubr.bf16.gmra.mrb[0].mxu0 %v601
        %v640 = vpop.f32.mrb[0].mxu0
        %v641 = vadd.f32 0.0, %v640
        %v642 = vpop.f32.mrb[0].mxu0
        %v643 = vpop.f32.mrb[0].mxu0
        %v644 = vpop.f32.mrb[0].mxu0
        %645 = vdwg.mxu0
        %v646 = vmul.f32 %v641, 0.35355338
        %v647 = vsel %vm315, %v646, -inf
        %v648 = vld [vmem:[#allocation2] sm:$0xff]
        %v649 = vsel %vm316, %v647, -inf
        %650 = vmax.xlane.f32.xlu0 %v649
        %v651 = vpop.xlane.xlu0 %650
        %v652 = vmax.f32 %v648, %v651
        %v653 = vsub.f32 %v648, %v652
        %v654 = vmul.f32 %v653, 1.442695
        %v655 = vpow.pop %v654
        %657 = vset.pattern.permute.xlu0 2
        %658 = vperm.xlu0 %657, %v652
        %v659 = vpop.permute.xlu0 %658
        %v661 = vsub.f32 %v647, %v659
        %v662 = vmul.f32 %v661, 1.442695
        %v663 = vpow.pop %v662
        %v664 = vld [vmem:[#allocation3] sm:$0xff]
        %v665 = vmul.f32 %v655, %v664
        %v666 = vsel %vm316, %v663, 0.0
        %667 = vadd.xlane.f32.xlu0 %v666
        %v668 = vpop.xlane.xlu0 %667
        %v669 = vadd.f32 %v665, %v668
        %vm670 = vcmask 23568
        %671 = vst.msk [vmem:[#allocation3] sm:$0xff] %vm670, %v669
        %v672 = vld [vmem:[#allocation4] sm:$0xff]
        %674 = vset.pattern.permute.xlu0 2
        %675 = vperm.xlu0 %674, %v655
        %v676 = vpop.permute.xlu0 %675
        %v678 = vmul.f32 %v676, %v672
        %v679 = vpack.c.bf16 %v663, %v663
        %680 = vrot.lane.b32.xlu0 %v539, 112
        %v681 = vpop.permute.xlu0 %680
        %v683 = vsel %vm316, %v679, 0
        %v686 = vsel %vm400, %v681, 0
        %688 = vmatprep.subr.bf16.mxu0 0
        %689 = vmatpush1.bf16.msra.mxu0 %v686
        %690 = vmatprep.subr.bf16.mxu0 0
        %691 = vmatpush1.bf16.msra.mxu0 0
        %692 = vmatprep.subr.bf16.mxu0 0
        %693 = vmatpush1.bf16.msra.mxu0 0
        %694 = vmatprep.subr.bf16.mxu0 0
        %695 = vmatpush1.bf16.msra.mxu0 0
        %696 = vmatprep.subr.bf16.mxu0 0
        %697 = vmatpush1.bf16.msra.mxu0 0
        %698 = vmatprep.subr.bf16.mxu0 0
        %699 = vmatpush1.bf16.msra.mxu0 0
        %700 = vmatprep.subr.bf16.mxu0 0
        %701 = vmatpush1.bf16.msra.mxu0 0
        %702 = vmatprep.subr.bf16.mxu0 0
        %703 = vmatpush1.bf16.msra.mxu0 0
        %704 = vmatprep.subr.bf16.mxu0 0
        %705 = vmatpush1.bf16.msra.mxu0 0
        %706 = vmatprep.subr.bf16.mxu0 0
        %707 = vmatpush1.bf16.msra.mxu0 0
        %708 = vmatprep.subr.bf16.mxu0 0
        %709 = vmatpush1.bf16.msra.mxu0 0
        %710 = vmatprep.subr.bf16.mxu0 0
        %711 = vmatpush1.bf16.msra.mxu0 0
        %712 = vmatprep.subr.bf16.mxu0 0
        %713 = vmatpush1.bf16.msra.mxu0 0
        %714 = vmatprep.subr.bf16.mxu0 0
        %715 = vmatpush1.bf16.msra.mxu0 0
        %716 = vmatprep.subr.bf16.mxu0 0
        %717 = vmatpush1.bf16.msra.mxu0 0
        %718 = vmatprep.subr.bf16.mxu0 0
        %719 = vmatpush1.bf16.msra.mxu0 0
        %720 = vmatprep.mubr.bf16.mxu0 0
        %721 = vmatmul.mubr.bf16.gmra.mrb[0].mxu0 %v683
        %v722 = vpop.f32.mrb[0].mxu0
        %v723 = vadd.f32 0.0, %v722
        %v724 = vpop.f32.mrb[0].mxu0
        %v725 = vpop.f32.mrb[0].mxu0
        %v726 = vpop.f32.mrb[0].mxu0
        %727 = vdwg.mxu0
        %729 = vrot.lane.b32.xlu0 %v723, 16
        %v730 = vpop.permute.xlu0 %729
        %v732 = vadd.f32 %v678, %v730
        %vm733 = vcmask 195712
        %734 = vst.msk [vmem:[#allocation4] sm:$0xff] %vm733, %v732
        %735 = vst.msk [vmem:[#allocation2] sm:$0xff] %vm670, %v652
        %736 = vrot.lane.b32.xlu0 %v449, 104
        %v737 = vpop.permute.xlu0 %736
        %738 = vrot.lane.b32.xlu0 %v454, 104
        %v739 = vpop.permute.xlu0 %738
        %v741 = vsel %vm316, %v737, 0
        %v744 = vsel %vm316, %v739, 0
        %746 = vmatprep.subr.bf16.mxu0 0
        %747 = vmatpush1.bf16.xpose.msra.mxu0 %v744
        %748 = vmatprep.subr.bf16.mxu0 0
        %749 = vmatpush1.bf16.xpose.msra.mxu0 0
        %750 = vmatprep.subr.bf16.mxu0 0
        %751 = vmatpush1.bf16.xpose.msra.mxu0 0
        %752 = vmatprep.subr.bf16.mxu0 0
        %753 = vmatpush1.bf16.xpose.msra.mxu0 0
        %754 = vmatprep.subr.bf16.mxu0 0
        %755 = vmatpush1.bf16.xpose.msra.mxu0 0
        %756 = vmatprep.subr.bf16.mxu0 0
        %757 = vmatpush1.bf16.xpose.msra.mxu0 0
        %758 = vmatprep.subr.bf16.mxu0 0
        %759 = vmatpush1.bf16.xpose.msra.mxu0 0
        %760 = vmatprep.subr.bf16.mxu0 0
        %761 = vmatpush1.bf16.xpose.msra.mxu0 0
        %762 = vmatprep.subr.bf16.mxu0 0
        %763 = vmatpush1.bf16.xpose.msra.mxu0 0
        %764 = vmatprep.subr.bf16.mxu0 0
        %765 = vmatpush1.bf16.xpose.msra.mxu0 0
        %766 = vmatprep.subr.bf16.mxu0 0
        %767 = vmatpush1.bf16.xpose.msra.mxu0 0
        %768 = vmatprep.subr.bf16.mxu0 0
        %769 = vmatpush1.bf16.xpose.msra.mxu0 0
        %770 = vmatprep.subr.bf16.mxu0 0
        %771 = vmatpush1.bf16.xpose.msra.mxu0 0
        %772 = vmatprep.subr.bf16.mxu0 0
        %773 = vmatpush1.bf16.xpose.msra.mxu0 0
        %774 = vmatprep.subr.bf16.mxu0 0
        %775 = vmatpush1.bf16.xpose.msra.mxu0 0
        %776 = vmatprep.subr.bf16.mxu0 0
        %777 = vmatpush1.bf16.xpose.msra.mxu0 0
        %778 = vmatprep.mubr.bf16.mxu0 0
        %779 = vmatmul.mubr.bf16.gmra.mrb[0].mxu0 %v741
        %v780 = vpop.f32.mrb[0].mxu0
        %v781 = vadd.f32 0.0, %v780
        %v782 = vpop.f32.mrb[0].mxu0
        %v783 = vpop.f32.mrb[0].mxu0
        %v784 = vpop.f32.mrb[0].mxu0
        %785 = vdwg.mxu0
        %v786 = vmul.f32 %v781, 0.35355338
        %v787 = vsel %vm315, %v786, -inf
        %v788 = vld [vmem:[#allocation2] sm:$0xff]
        %v789 = vsel %vm316, %v787, -inf
        %790 = vmax.xlane.f32.xlu0 %v789
        %v791 = vpop.xlane.xlu0 %790
        %v792 = vmax.f32 %v788, %v791
        %v793 = vsub.f32 %v788, %v792
        %v794 = vmul.f32 %v793, 1.442695
        %v795 = vpow.pop %v794
        %797 = vset.pattern.permute.xlu0 3
        %798 = vperm.xlu0 %797, %v792
        %v799 = vpop.permute.xlu0 %798
        %v801 = vsub.f32 %v787, %v799
        %v802 = vmul.f32 %v801, 1.442695
        %v803 = vpow.pop %v802
        %v804 = vld [vmem:[#allocation3] sm:$0xff]
        %v805 = vmul.f32 %v795, %v804
        %v806 = vsel %vm316, %v803, 0.0
        %807 = vadd.xlane.f32.xlu0 %v806
        %v808 = vpop.xlane.xlu0 %807
        %v809 = vadd.f32 %v805, %v808
        %vm810 = vcmask 31768
        %811 = vst.msk [vmem:[#allocation3] sm:$0xff] %vm810, %v809
        %v812 = vld [vmem:[#allocation4] sm:$0xff]
        %814 = vset.pattern.permute.xlu0 3
        %815 = vperm.xlu0 %814, %v795
        %v816 = vpop.permute.xlu0 %815
        %v818 = vmul.f32 %v816, %v812
        %v819 = vpack.c.bf16 %v803, %v803
        %820 = vrot.lane.b32.xlu0 %v539, 104
        %v821 = vpop.permute.xlu0 %820
        %v823 = vsel %vm316, %v819, 0
        %v826 = vsel %vm400, %v821, 0
        %828 = vmatprep.subr.bf16.mxu0 0
        %829 = vmatpush1.bf16.msra.mxu0 %v826
        %830 = vmatprep.subr.bf16.mxu0 0
        %831 = vmatpush1.bf16.msra.mxu0 0
        %832 = vmatprep.subr.bf16.mxu0 0
        %833 = vmatpush1.bf16.msra.mxu0 0
        %834 = vmatprep.subr.bf16.mxu0 0
        %835 = vmatpush1.bf16.msra.mxu0 0
        %836 = vmatprep.subr.bf16.mxu0 0
        %837 = vmatpush1.bf16.msra.mxu0 0
        %838 = vmatprep.subr.bf16.mxu0 0
        %839 = vmatpush1.bf16.msra.mxu0 0
        %840 = vmatprep.subr.bf16.mxu0 0
        %841 = vmatpush1.bf16.msra.mxu0 0
        %842 = vmatprep.subr.bf16.mxu0 0
        %843 = vmatpush1.bf16.msra.mxu0 0
        %844 = vmatprep.subr.bf16.mxu0 0
        %845 = vmatpush1.bf16.msra.mxu0 0
        %846 = vmatprep.subr.bf16.mxu0 0
        %847 = vmatpush1.bf16.msra.mxu0 0
        %848 = vmatprep.subr.bf16.mxu0 0
        %849 = vmatpush1.bf16.msra.mxu0 0
        %850 = vmatprep.subr.bf16.mxu0 0
        %851 = vmatpush1.bf16.msra.mxu0 0
        %852 = vmatprep.subr.bf16.mxu0 0
        %853 = vmatpush1.bf16.msra.mxu0 0
        %854 = vmatprep.subr.bf16.mxu0 0
        %855 = vmatpush1.bf16.msra.mxu0 0
        %856 = vmatprep.subr.bf16.mxu0 0
        %857 = vmatpush1.bf16.msra.mxu0 0
        %858 = vmatprep.subr.bf16.mxu0 0
        %859 = vmatpush1.bf16.msra.mxu0 0
        %860 = vmatprep.mubr.bf16.mxu0 0
        %861 = vmatmul.mubr.bf16.gmra.mrb[0].mxu0 %v823
        %v862 = vpop.f32.mrb[0].mxu0
        %v863 = vadd.f32 0.0, %v862
        %v864 = vpop.f32.mrb[0].mxu0
        %v865 = vpop.f32.mrb[0].mxu0
        %v866 = vpop.f32.mrb[0].mxu0
        %867 = vdwg.mxu0
        %869 = vrot.lane.b32.xlu0 %v863, 24
        %v870 = vpop.permute.xlu0 %869
        %v872 = vadd.f32 %v818, %v870
        %vm873 = vcmask 261312
        %874 = vst.msk [vmem:[#allocation4] sm:$0xff] %vm873, %v872
        %875 = vst.msk [vmem:[#allocation2] sm:$0xff] %vm810, %v792
      $region40: #{mha_forward.4} parent=31 // pred_fallthru
        _
      // Predicated region
      $region41: #{mha_forward.4} parent=31 // pred_check
        %p876 = pneg %p289
      $region42: #{mha_forward.4} parent=31 // pred_check_branch
        %878 = sbr.rel (%p876) target = $region44
      $region43: #{mha_forward.4} parent=31 // pred_region
        %v879 = vld [vmem:[#allocation3] sm:$0xff]
        %v880 = vrcp.pop %v879
        %882 = vset.pattern.permute.xlu0 0
        %883 = vperm.xlu0 %882, %v880
        %v884 = vpop.permute.xlu0 %883
        %886 = vset.pattern.permute.xlu0 1
        %887 = vperm.xlu0 %886, %v880
        %v888 = vpop.permute.xlu0 %887
        %890 = vset.pattern.permute.xlu0 2
        %891 = vperm.xlu0 %890, %v880
        %v892 = vpop.permute.xlu0 %891
        %894 = vset.pattern.permute.xlu0 3
        %895 = vperm.xlu0 %894, %v880
        %v896 = vpop.permute.xlu0 %895
        %vm898 = vcmask 64512
        %v899 = vsel %vm898, %v884, %v888
        %vm900 = vcmask 130048
        %v901 = vsel %vm900, %v899, %v892
        %vm902 = vcmask 195584
        %v903 = vsel %vm902, %v901, %v896
        %v904 = vld [vmem:[#allocation4] sm:$0xff]
        %v905 = vmul.f32 %v904, %v903
        %v906 = vpack.c.bf16 %v905, %v905
        %vm907 = vcmask 257024
        %908 = vst.msk [vmem:[%s287] sm:$0xf] %vm907, %v906
      $region44: #{mha_forward.4} parent=31 // pred_fallthru
        _
      %p909 = scmp.lt.s32.totalorder %s19, 1
      %s910 = scalar_select %p909, %s19, 1
      %p911 = scmp.lt.s32.totalorder %s20, 0
      %s912 = scalar_select %p911, %s20, 0
      %s913 = sadd.s32 %s912, %s910
      %s914 = smul.addr %s913, 4
      %s915 = scalar_lea.vmem %s3, %s914
      // Predicated region
      $region45: #{mha_forward.4} parent=31 // pred_check
        %p916 = pneg %p145
      $region46: #{mha_forward.4} parent=31 // pred_check_branch
        %918 = sbr.rel (%p916) target = $region48
      $region47: #{mha_forward.4} parent=31 // pred_region
        _
      $region48: #{mha_forward.4} parent=31 // pred_fallthru
        _
    $region32: #{mha_forward.4} parent=5 // pred_fallthru
      _
    %p919 = scmp.le.s32.totalorder 2, %s9
    // Predicated region
    $region49: #{mha_forward.4} parent=5 // pred_check
      %p920 = pneg %p919
    $region50: #{mha_forward.4} parent=5 // pred_check_branch
      %922 = sbr.rel (%p920) target = $region52
    $region51: #{mha_forward.4} parent=5 // pred_region
      %s923 = ssub.s32 %s9, 2
      // Predicated region
      $region53: #{mha_forward.4} parent=51 // pred_check
        %p924 = pneg %p151
      $region54: #{mha_forward.4} parent=51 // pred_check_branch
        %926 = sbr.rel (%p924) target = $region56
      $region55: #{mha_forward.4} parent=51 // pred_region
        %p927 = scmp.lt.s32.totalorder %s22, 1
        %s928 = scalar_select %p927, %s22, 1
        %p929 = scmp.lt.s32.totalorder %s23, 0
        %s930 = scalar_select %p929, %s23, 0
        %s931 = sadd.s32 %s930, %s928
        %s932 = smul.addr %s931, 4
        %s933 = scalar_lea.vmem %s3, %s932
      $region56: #{mha_forward.4} parent=51 // pred_fallthru
        _
    $region52: #{mha_forward.4} parent=5 // pred_fallthru
      _
  $region6: #{mha_forward.4} parent=0 // loop_footer
    %s13 = sadd.s32 1, %s9
  $region7: #{mha_forward.4} parent=0 // loop_footer_branch
    %8 = sbr.rel target = $region3
  $region8: #{mha_forward.4} parent=0 // loop_exit
    _

</llo_original>
